<compile_context>
chip_gen: v7x
topology: tpu7x:2x2x1
jax: 0.10.0
libtpu: 0.0.40
codegen_flags: <defaults>
</compile_context>

<pallas_src>
import numpy as np
import jax
import jax.numpy as jnp
from jax.experimental import pallas as pl
from jax.experimental.pallas import tpu as pltpu

# ----------------------------- model geometry -----------------------------
BATCH = 2
H_IN, W_IN = 4, 220            # Encoder obs_shape = (1, 4, 220)
RGS_DIM, ACT_DIM = 8, 2
HIDDEN_DIM = 32                # hidden_dim == encoder_feature_dim == 32
NC1 = 32                       # conv1 / conv2 output channels

H1, W1 = 3, 21                 # conv1 out (k=(2,20), s=(1,10))
POOL1, W1P = 5, 4              # pool1 (1,5): 21 -> 4 (col 20 dropped)
H2, W2 = 2, 3                  # conv2 out (k=(2,2), s=(1,1))
POOL2, W2P = 2, 1              # pool2 (1,2): 3 -> 1 (col 2 dropped)
COL1 = POOL1 * W1P * NC1       # 640 conv1 matmul columns per kh tap

# packed weight-slab row offsets (width 128, all offsets 8-aligned)
R_WZ, R_E1A, R_E1B = 0, 128, 160
R_QWE, R_QWR, R_QWA = 192, 224, 232
R_QW2, R_QW3, WSLAB_ROWS = 240, 304, 368


# ------------------------------ fused kernel ------------------------------
def _critic_kernel(x_ref, rgs_ref, act_ref, wbig_ref, w_ref, b_ref, o_ref):
    f32 = jnp.float32
    bsz = rgs_ref.shape[0]
    rows = H_IN * bsz                                 # obs rows

    def mm(a, w):
        return jnp.dot(a, w, preferred_element_type=f32)

    # (1) row reorder (b, h) -> (h, b): exact permutation matmul (keeps wrapper glue-free,
    #     and makes every later slice a contiguous sublane slice).
    xt = mm(b_ref[8:8 + rows, 0:rows], x_ref[...])                        # (4B, 220)

    # (2) conv1: both kh taps in ONE matmul against the Toeplitz weight.
    #     column = kh*640 + p*128 + wo*32 + cout
    c1 = mm(xt, wbig_ref[...])                                            # (4B, 1280)
    a1 = c1[0:H1 * bsz, 0:COL1] + c1[bsz:H_IN * bsz, COL1:2 * COL1]       # rows = (h1, b)

    # (3) pool1 = max over 5 contiguous 128-lane slabs; bias+ReLU commute with the max.
    m1 = a1[:, 0:128]
    for p in range(1, POOL1):
        m1 = jnp.maximum(m1, a1[:, p * 128:(p + 1) * 128])
    y1 = jnp.maximum(m1 + b_ref[0:1, 0:128], 0.0)                         # (3B, 128)

    # (4) conv2: both height taps in ONE matmul; pool2 folded; w2=2 never computed.
    #     column = i*64 + w2*32 + cout
    c2 = mm(y1, w_ref[R_WZ:R_WZ + 128, 0:128])                            # (3B, 128)
    s2 = c2[0:H2 * bsz, 0:64] + c2[bsz:H1 * bsz, 64:128]                  # rows = (h2, b)
    y2 = jnp.maximum(jnp.maximum(s2[:, 0:NC1], s2[:, NC1:2 * NC1])
                     + b_ref[1:2, 0:NC1], 0.0)                            # (2B, 32)

    # (5) encoder fc1; the NCHW flatten is handled by the h2-split of the weight rows.
    eh = jnp.maximum(mm(y2[0:bsz], w_ref[R_E1A:R_E1A + NC1, 0:HIDDEN_DIM])
                     + mm(y2[bsz:2 * bsz], w_ref[R_E1B:R_E1B + NC1, 0:HIDDEN_DIM])
                     + b_ref[2:3, 0:HIDDEN_DIM], 0.0)                     # (B, 32)

    # (6) merged twin-Q trunk; enc_fc2 folded into layer-1 weights (exact: it is linear).
    h1 = jnp.maximum(mm(eh, w_ref[R_QWE:R_QWE + HIDDEN_DIM, 0:64])
                     + mm(rgs_ref[...], w_ref[R_QWR:R_QWR + RGS_DIM, 0:64])
                     + mm(act_ref[...], w_ref[R_QWA:R_QWA + ACT_DIM, 0:64])
                     + b_ref[3:4, 0:64], 0.0)                             # (B, 64) = [Q1|Q2]
    hq = jnp.maximum(mm(h1, w_ref[R_QW2:R_QW2 + 64, 0:64]) + b_ref[4:5, 0:64], 0.0)
    o_ref[...] = mm(hq, w_ref[R_QW3:R_QW3 + 64, 0:2]) + b_ref[5:6, 0:2]   # (B, 2)


# ------------------------------- wrapper -----------------------------------
def critic_forward(params, obs, robot_goal_state, action):
    b = obs.shape[0]
    x = obs.reshape(b * H_IN, W_IN)          # metadata-only reshape; no XLA compute glue
    vmem = pl.BlockSpec(memory_space=pltpu.MemorySpace.VMEM)
    q = pl.pallas_call(
        _critic_kernel,
        out_shape=jax.ShapeDtypeStruct((b, 2), jnp.float32),
        in_specs=[vmem] * 6,
        out_specs=vmem,
        compiler_params=pltpu.CompilerParams(vmem_limit_bytes=32 * 1024 * 1024),
    )(x, robot_goal_state, action, params["wbig"], params["wslab"], params["bslab"])
    return q[:, 0:1], q[:, 1:2]


# ------------------------- raw (PyTorch-layout) params ----------------------
def init_raw_params(key):
    ks = jax.random.split(key, 20)

    def u(k, shape, fan_in):
        bnd = 1.0 / np.sqrt(fan_in)
        return np.asarray(jax.random.uniform(k, shape, jnp.float32, -bnd, bnd))

    raw = {}
    raw["w_conv1"], raw["b_conv1"] = u(ks[0], (NC1, 1, 2, 20), 40), u(ks[1], (NC1,), 40)
    raw["w_conv2"], raw["b_conv2"] = u(ks[2], (NC1, NC1, 2, 2), 128), u(ks[3], (NC1,), 128)
    raw["w_fc1"], raw["b_fc1"] = u(ks[4], (HIDDEN_DIM, 64), 64), u(ks[5], (HIDDEN_DIM,), 64)
    raw["w_fc2"], raw["b_fc2"] = u(ks[6], (HIDDEN_DIM, HIDDEN_DIM), 32), u(ks[7], (HIDDEN_DIM,), 32)
    qin = HIDDEN_DIM + RGS_DIM + ACT_DIM
    for name, base in (("q1", 8), ("q2", 14)):
        raw[f"{name}_w1"], raw[f"{name}_b1"] = u(ks[base], (32, qin), qin), u(ks[base + 1], (32,), qin)
        raw[f"{name}_w2"], raw[f"{name}_b2"] = u(ks[base + 2], (32, 32), 32), u(ks[base + 3], (32,), 32)
        raw[f"{name}_w3"], raw[f"{name}_b3"] = u(ks[base + 4], (1, 32), 32), u(ks[base + 5], (1,), 32)
    return raw


# --------------------------- pack params for the kernel ---------------------
def pack_params(raw, batch):
    w1, b1 = raw["w_conv1"], raw["b_conv1"]
    w2, b2 = raw["w_conv2"], raw["b_conv2"]
    wf1, bf1 = raw["w_fc1"], raw["b_fc1"]
    wf2, bf2 = raw["w_fc2"], raw["b_fc2"]

    # conv1 Toeplitz weight (220, 1280): column = kh*640 + p*128 + wo*32 + cout
    wbig = np.zeros((W_IN, 2 * COL1), np.float32)
    for kh in range(2):
        for p in range(POOL1):
            for wo in range(W1P):
                w1col = POOL1 * wo + p                        # conv1 output column (0..19)
                col = kh * COL1 + p * 128 + wo * NC1
                row = 10 * w1col
                wbig[row:row + 20, col:col + NC1] = w1[:, 0, kh, :].T   # [kw, cout]

    # conv2 weight (128, 128): row = wo*32 + cin, column = i*64 + w2*32 + cout
    wz = np.zeros((128, 128), np.float32)
    for i in range(2):
        for j in range(2):
            for w2c in range(2):                              # kept w2 columns only
                wo = w2c + j
                wz[wo * NC1:(wo + 1) * NC1,
                   i * 64 + w2c * NC1:i * 64 + (w2c + 1) * NC1] = w2[:, :, i, j].T

    # encoder fc1 split by h2 (NCHW flatten index = 2*c + h2)
    e1wa = wf1.T[0::2, :].copy()                              # (32, 32) rows = channel, h2=0
    e1wb = wf1.T[1::2, :].copy()                              # h2 = 1

    # merged twin-Q layer 1, with enc_fc2 folded in (exact: no activation after fc2)
    w1m = np.concatenate([raw["q1_w1"].T, raw["q2_w1"].T], axis=1)   # (42, 64)
    b1m = np.concatenate([raw["q1_b1"], raw["q2_b1"]])               # (64,)
    qwe = wf2.T @ w1m[0:HIDDEN_DIM]                                  # (32, 64)
    qb1 = b1m + bf2 @ w1m[0:HIDDEN_DIM]
    qwr = w1m[HIDDEN_DIM:HIDDEN_DIM + RGS_DIM]                       # (8, 64)
    qwa = w1m[HIDDEN_DIM + RGS_DIM:]                                 # (2, 64)

    qw2 = np.zeros((64, 64), np.float32)
    qw2[0:32, 0:32] = raw["q1_w2"].T
    qw2[32:64, 32:64] = raw["q2_w2"].T
    qb2 = np.concatenate([raw["q1_b2"], raw["q2_b2"]])
    qw3 = np.zeros((64, 2), np.float32)
    qw3[0:32, 0] = raw["q1_w3"][0]
    qw3[32:64, 1] = raw["q2_w3"][0]
    qb3 = np.array([raw["q1_b3"][0], raw["q2_b3"][0]], np.float32)

    wslab = np.zeros((WSLAB_ROWS, 128), np.float32)
    wslab[R_WZ:R_WZ + 128, 0:128] = wz
    wslab[R_E1A:R_E1A + 32, 0:32] = e1wa
    wslab[R_E1B:R_E1B + 32, 0:32] = e1wb
    wslab[R_QWE:R_QWE + 32, 0:64] = qwe
    wslab[R_QWR:R_QWR + 8, 0:64] = qwr
    wslab[R_QWA:R_QWA + 2, 0:64] = qwa
    wslab[R_QW2:R_QW2 + 64, 0:64] = qw2
    wslab[R_QW3:R_QW3 + 64, 0:2] = qw3

    nrows = 8 + ((H_IN * batch + 7) // 8) * 8
    bslab = np.zeros((nrows, 128), np.float32)
    bslab[0, 0:128] = np.tile(b1, W1P)        # conv1 bias, tiled over pooled columns
    bslab[1, 0:32] = b2
    bslab[2, 0:32] = bf1
    bslab[3, 0:64] = qb1
    bslab[4, 0:64] = qb2
    bslab[5, 0:2] = qb3
    # (b, h) -> (h, b) row permutation, applied in-kernel as an exact matmul
    for h in range(H_IN):
        for b in range(batch):
            bslab[8 + h * batch + b, b * H_IN + h] = 1.0

    return {"wbig": jnp.asarray(wbig), "wslab": jnp.asarray(wslab), "bslab": jnp.asarray(bslab)}


# --------------------------- NumPy reference forward ------------------------
def reference_forward(raw, obs, rgs, act):
    x = obs.reshape(obs.shape[0], 1, H_IN, W_IN)[:, 0].astype(np.float32)
    bsz = x.shape[0]
    w1, b1, w2, b2 = raw["w_conv1"], raw["b_conv1"], raw["w_conv2"], raw["b_conv2"]

    out1 = np.zeros((bsz, NC1, H1, W1), np.float32)
    for h in range(H1):
        for w in range(W1):
            patch = x[:, h:h + 2, 10 * w:10 * w + 20].reshape(bsz, -1)
            out1[:, :, h, w] = patch @ w1.reshape(NC1, -1).T + b1
    out1 = np.maximum(out1, 0.0)
    y1 = out1[:, :, :, :W1P * POOL1].reshape(bsz, NC1, H1, W1P, POOL1).max(axis=4)

    out2 = np.zeros((bsz, NC1, H2, W2), np.float32)
    for h in range(H2):
        for w in range(W2):
            patch = y1[:, :, h:h + 2, w:w + 2].reshape(bsz, -1)
            out2[:, :, h, w] = patch @ w2.reshape(NC1, -1).T + b2
    out2 = np.maximum(out2, 0.0)
    y2 = out2[:, :, :, :2].reshape(bsz, NC1, H2, 1, 2).max(axis=4)

    flat = y2.reshape(bsz, -1)
    eh = np.maximum(flat @ raw["w_fc1"].T + raw["b_fc1"], 0.0)
    enc = eh @ raw["w_fc2"].T + raw["b_fc2"]
    oa = np.concatenate([enc, rgs, act], axis=1).astype(np.float32)

    def qhead(p):
        h = np.maximum(oa @ raw[f"{p}_w1"].T + raw[f"{p}_b1"], 0.0)
        h = np.maximum(h @ raw[f"{p}_w2"].T + raw[f"{p}_b2"], 0.0)
        return h @ raw[f"{p}_w3"].T + raw[f"{p}_b3"]

    return qhead("q1"), qhead("q2")


# ------------------------------------ main ----------------------------------
if __name__ == "__main__":
    key = jax.random.PRNGKey(0)
    k_param, k_obs, k_rgs, k_act = jax.random.split(key, 4)

    raw = init_raw_params(k_param)
    params = pack_params(raw, BATCH)

    obs = jax.random.normal(k_obs, (BATCH, 1, H_IN, W_IN), jnp.float32)
    robot_goal_state = jax.random.normal(k_rgs, (BATCH, RGS_DIM), jnp.float32)
    action = jax.random.normal(k_act, (BATCH, ACT_DIM), jnp.float32)

    q1, q2 = jax.jit(critic_forward)(params, obs, robot_goal_state, action)
    jax.block_until_ready((q1, q2))
    assert q1.shape == (BATCH, 1) and q2.shape == (BATCH, 1)

    # numerical parity against a straight NumPy port of the PyTorch forward
    r1, r2 = reference_forward(raw, np.asarray(obs), np.asarray(robot_goal_state),
                               np.asarray(action))
    np.testing.assert_allclose(np.asarray(q1), r1, rtol=3e-2, atol=3e-2)
    np.testing.assert_allclose(np.asarray(q2), r2, rtol=3e-2, atol=3e-2)

    print("KERNEL_OK")
</pallas_src>

<mosaic_0001>
module attributes {stable_mosaic.version = 11 : i64} {
  func.func @_critic_kernel(%arg0: memref<8x220xf32, #tpu.memory_space<vmem>>, %arg1: memref<2x8xf32, #tpu.memory_space<vmem>>, %arg2: memref<2x2xf32, #tpu.memory_space<vmem>>, %arg3: memref<220x1280xf32, #tpu.memory_space<vmem>>, %arg4: memref<368x128xf32, #tpu.memory_space<vmem>>, %arg5: memref<16x128xf32, #tpu.memory_space<vmem>>, %arg6: memref<2x2xf32, #tpu.memory_space<vmem>>) attributes {dimension_semantics = [], scalar_prefetch = 0 : i64, scratch_operands = 0 : i64, tpu.core_type = #tpu.core_type<tc>} {
    %c8 = arith.constant 8 : index
    %c0 = arith.constant 0 : index
    %0 = vector.load %arg5[%c8, %c0] : memref<16x128xf32, #tpu.memory_space<vmem>>, vector<8x8xf32>
    %c0_0 = arith.constant 0 : index
    %c0_1 = arith.constant 0 : index
    %1 = vector.load %arg0[%c0_0, %c0_1] : memref<8x220xf32, #tpu.memory_space<vmem>>, vector<8x220xf32>
    %cst = arith.constant dense<0.000000e+00> : vector<8x220xf32>
    %2 = tpu.matmul %0, %1, %cst {dimension_numbers = #tpu.dot_dimension_numbers<[1], [0], [0], [1], [0, 0, 1, 1], [], []>} : vector<8x8xf32>, vector<8x220xf32>, vector<8x220xf32> -> vector<8x220xf32>
    %c0_2 = arith.constant 0 : index
    %c0_3 = arith.constant 0 : index
    %3 = vector.load %arg3[%c0_2, %c0_3] : memref<220x1280xf32, #tpu.memory_space<vmem>>, vector<220x1280xf32>
    %cst_4 = arith.constant dense<0.000000e+00> : vector<8x1280xf32>
    %4 = tpu.matmul %2, %3, %cst_4 {dimension_numbers = #tpu.dot_dimension_numbers<[1], [0], [0], [1], [0, 0, 1, 1], [], []>} : vector<8x220xf32>, vector<220x1280xf32>, vector<8x1280xf32> -> vector<8x1280xf32>
    %5 = vector.extract_strided_slice %4 {offsets = [0, 0], sizes = [6, 640], strides = [1, 1]} : vector<8x1280xf32> to vector<6x640xf32>
    %6 = vector.extract_strided_slice %4 {offsets = [2, 640], sizes = [6, 640], strides = [1, 1]} : vector<8x1280xf32> to vector<6x640xf32>
    %7 = arith.addf %5, %6 : vector<6x640xf32>
    %8 = vector.extract_strided_slice %7 {offsets = [0, 0], sizes = [6, 128], strides = [1, 1]} : vector<6x640xf32> to vector<6x128xf32>
    %9 = vector.extract_strided_slice %7 {offsets = [0, 128], sizes = [6, 128], strides = [1, 1]} : vector<6x640xf32> to vector<6x128xf32>
    %10 = arith.maximumf %8, %9 : vector<6x128xf32>
    %11 = vector.extract_strided_slice %7 {offsets = [0, 256], sizes = [6, 128], strides = [1, 1]} : vector<6x640xf32> to vector<6x128xf32>
    %12 = arith.maximumf %10, %11 : vector<6x128xf32>
    %13 = vector.extract_strided_slice %7 {offsets = [0, 384], sizes = [6, 128], strides = [1, 1]} : vector<6x640xf32> to vector<6x128xf32>
    %14 = arith.maximumf %12, %13 : vector<6x128xf32>
    %15 = vector.extract_strided_slice %7 {offsets = [0, 512], sizes = [6, 128], strides = [1, 1]} : vector<6x640xf32> to vector<6x128xf32>
    %16 = arith.maximumf %14, %15 : vector<6x128xf32>
    %c0_5 = arith.constant 0 : index
    %c0_6 = arith.constant 0 : index
    %17 = vector.load %arg5[%c0_5, %c0_6] : memref<16x128xf32, #tpu.memory_space<vmem>>, vector<1x128xf32>
    %18 = vector.broadcast %17 : vector<1x128xf32> to vector<6x128xf32>
    %19 = arith.addf %16, %18 : vector<6x128xf32>
    %cst_7 = arith.constant 0.000000e+00 : f32
    %20 = vector.broadcast %cst_7 : f32 to vector<6x128xf32>
    %21 = arith.maximumf %19, %20 : vector<6x128xf32>
    %c0_8 = arith.constant 0 : index
    %c0_9 = arith.constant 0 : index
    %22 = vector.load %arg4[%c0_8, %c0_9] : memref<368x128xf32, #tpu.memory_space<vmem>>, vector<128x128xf32>
    %cst_10 = arith.constant dense<0.000000e+00> : vector<6x128xf32>
    %23 = tpu.matmul %21, %22, %cst_10 {dimension_numbers = #tpu.dot_dimension_numbers<[1], [0], [0], [1], [0, 0, 1, 1], [], []>} : vector<6x128xf32>, vector<128x128xf32>, vector<6x128xf32> -> vector<6x128xf32>
    %24 = vector.extract_strided_slice %23 {offsets = [0, 0], sizes = [4, 64], strides = [1, 1]} : vector<6x128xf32> to vector<4x64xf32>
    %25 = vector.extract_strided_slice %23 {offsets = [2, 64], sizes = [4, 64], strides = [1, 1]} : vector<6x128xf32> to vector<4x64xf32>
    %26 = arith.addf %24, %25 : vector<4x64xf32>
    %27 = vector.extract_strided_slice %26 {offsets = [0, 0], sizes = [4, 32], strides = [1, 1]} : vector<4x64xf32> to vector<4x32xf32>
    %28 = vector.extract_strided_slice %26 {offsets = [0, 32], sizes = [4, 32], strides = [1, 1]} : vector<4x64xf32> to vector<4x32xf32>
    %29 = arith.maximumf %27, %28 : vector<4x32xf32>
    %c1 = arith.constant 1 : index
    %c0_11 = arith.constant 0 : index
    %30 = vector.load %arg5[%c1, %c0_11] : memref<16x128xf32, #tpu.memory_space<vmem>>, vector<1x32xf32>
    %31 = vector.broadcast %30 : vector<1x32xf32> to vector<4x32xf32>
    %32 = arith.addf %29, %31 : vector<4x32xf32>
    %cst_12 = arith.constant 0.000000e+00 : f32
    %33 = vector.broadcast %cst_12 : f32 to vector<4x32xf32>
    %34 = arith.maximumf %32, %33 : vector<4x32xf32>
    %35 = vector.extract_strided_slice %34 {offsets = [0, 0], sizes = [2, 32], strides = [1, 1]} : vector<4x32xf32> to vector<2x32xf32>
    %c128 = arith.constant 128 : index
    %c0_13 = arith.constant 0 : index
    %36 = vector.load %arg4[%c128, %c0_13] : memref<368x128xf32, #tpu.memory_space<vmem>>, vector<32x32xf32>
    %cst_14 = arith.constant dense<0.000000e+00> : vector<2x32xf32>
    %37 = tpu.matmul %35, %36, %cst_14 {dimension_numbers = #tpu.dot_dimension_numbers<[1], [0], [0], [1], [0, 0, 1, 1], [], []>} : vector<2x32xf32>, vector<32x32xf32>, vector<2x32xf32> -> vector<2x32xf32>
    %38 = vector.extract_strided_slice %34 {offsets = [2, 0], sizes = [2, 32], strides = [1, 1]} : vector<4x32xf32> to vector<2x32xf32>
    %c160 = arith.constant 160 : index
    %c0_15 = arith.constant 0 : index
    %39 = vector.load %arg4[%c160, %c0_15] : memref<368x128xf32, #tpu.memory_space<vmem>>, vector<32x32xf32>
    %cst_16 = arith.constant dense<0.000000e+00> : vector<2x32xf32>
    %40 = tpu.matmul %38, %39, %cst_16 {dimension_numbers = #tpu.dot_dimension_numbers<[1], [0], [0], [1], [0, 0, 1, 1], [], []>} : vector<2x32xf32>, vector<32x32xf32>, vector<2x32xf32> -> vector<2x32xf32>
    %41 = arith.addf %37, %40 : vector<2x32xf32>
    %c2 = arith.constant 2 : index
    %c0_17 = arith.constant 0 : index
    %42 = vector.load %arg5[%c2, %c0_17] : memref<16x128xf32, #tpu.memory_space<vmem>>, vector<1x32xf32>
    %43 = vector.broadcast %42 : vector<1x32xf32> to vector<2x32xf32>
    %44 = arith.addf %41, %43 : vector<2x32xf32>
    %cst_18 = arith.constant 0.000000e+00 : f32
    %45 = vector.broadcast %cst_18 : f32 to vector<2x32xf32>
    %46 = arith.maximumf %44, %45 : vector<2x32xf32>
    %c192 = arith.constant 192 : index
    %c0_19 = arith.constant 0 : index
    %47 = vector.load %arg4[%c192, %c0_19] : memref<368x128xf32, #tpu.memory_space<vmem>>, vector<32x64xf32>
    %cst_20 = arith.constant dense<0.000000e+00> : vector<2x64xf32>
    %48 = tpu.matmul %46, %47, %cst_20 {dimension_numbers = #tpu.dot_dimension_numbers<[1], [0], [0], [1], [0, 0, 1, 1], [], []>} : vector<2x32xf32>, vector<32x64xf32>, vector<2x64xf32> -> vector<2x64xf32>
    %c0_21 = arith.constant 0 : index
    %c0_22 = arith.constant 0 : index
    %49 = vector.load %arg1[%c0_21, %c0_22] : memref<2x8xf32, #tpu.memory_space<vmem>>, vector<2x8xf32>
    %c224 = arith.constant 224 : index
    %c0_23 = arith.constant 0 : index
    %50 = vector.load %arg4[%c224, %c0_23] : memref<368x128xf32, #tpu.memory_space<vmem>>, vector<8x64xf32>
    %cst_24 = arith.constant dense<0.000000e+00> : vector<2x64xf32>
    %51 = tpu.matmul %49, %50, %cst_24 {dimension_numbers = #tpu.dot_dimension_numbers<[1], [0], [0], [1], [0, 0, 1, 1], [], []>} : vector<2x8xf32>, vector<8x64xf32>, vector<2x64xf32> -> vector<2x64xf32>
    %52 = arith.addf %48, %51 : vector<2x64xf32>
    %c0_25 = arith.constant 0 : index
    %c0_26 = arith.constant 0 : index
    %53 = vector.load %arg2[%c0_25, %c0_26] : memref<2x2xf32, #tpu.memory_space<vmem>>, vector<2x2xf32>
    %c232 = arith.constant 232 : index
    %c0_27 = arith.constant 0 : index
    %54 = vector.load %arg4[%c232, %c0_27] : memref<368x128xf32, #tpu.memory_space<vmem>>, vector<2x64xf32>
    %cst_28 = arith.constant dense<0.000000e+00> : vector<2x64xf32>
    %55 = tpu.matmul %53, %54, %cst_28 {dimension_numbers = #tpu.dot_dimension_numbers<[1], [0], [0], [1], [0, 0, 1, 1], [], []>} : vector<2x2xf32>, vector<2x64xf32>, vector<2x64xf32> -> vector<2x64xf32>
    %56 = arith.addf %52, %55 : vector<2x64xf32>
    %c3 = arith.constant 3 : index
    %c0_29 = arith.constant 0 : index
    %57 = vector.load %arg5[%c3, %c0_29] : memref<16x128xf32, #tpu.memory_space<vmem>>, vector<1x64xf32>
    %58 = vector.broadcast %57 : vector<1x64xf32> to vector<2x64xf32>
    %59 = arith.addf %56, %58 : vector<2x64xf32>
    %cst_30 = arith.constant 0.000000e+00 : f32
    %60 = vector.broadcast %cst_30 : f32 to vector<2x64xf32>
    %61 = arith.maximumf %59, %60 : vector<2x64xf32>
    %c240 = arith.constant 240 : index
    %c0_31 = arith.constant 0 : index
    %62 = vector.load %arg4[%c240, %c0_31] : memref<368x128xf32, #tpu.memory_space<vmem>>, vector<64x64xf32>
    %cst_32 = arith.constant dense<0.000000e+00> : vector<2x64xf32>
    %63 = tpu.matmul %61, %62, %cst_32 {dimension_numbers = #tpu.dot_dimension_numbers<[1], [0], [0], [1], [0, 0, 1, 1], [], []>} : vector<2x64xf32>, vector<64x64xf32>, vector<2x64xf32> -> vector<2x64xf32>
    %c4 = arith.constant 4 : index
    %c0_33 = arith.constant 0 : index
    %64 = vector.load %arg5[%c4, %c0_33] : memref<16x128xf32, #tpu.memory_space<vmem>>, vector<1x64xf32>
    %65 = vector.broadcast %64 : vector<1x64xf32> to vector<2x64xf32>
    %66 = arith.addf %63, %65 : vector<2x64xf32>
    %cst_34 = arith.constant 0.000000e+00 : f32
    %67 = vector.broadcast %cst_34 : f32 to vector<2x64xf32>
    %68 = arith.maximumf %66, %67 : vector<2x64xf32>
    %c304 = arith.constant 304 : index
    %c0_35 = arith.constant 0 : index
    %69 = vector.load %arg4[%c304, %c0_35] : memref<368x128xf32, #tpu.memory_space<vmem>>, vector<64x2xf32>
    %cst_36 = arith.constant dense<0.000000e+00> : vector<2x2xf32>
    %70 = tpu.matmul %68, %69, %cst_36 {dimension_numbers = #tpu.dot_dimension_numbers<[1], [0], [0], [1], [0, 0, 1, 1], [], []>} : vector<2x64xf32>, vector<64x2xf32>, vector<2x2xf32> -> vector<2x2xf32>
    %c5 = arith.constant 5 : index
    %c0_37 = arith.constant 0 : index
    %71 = vector.load %arg5[%c5, %c0_37] : memref<16x128xf32, #tpu.memory_space<vmem>>, vector<1x2xf32>
    %72 = vector.broadcast %71 : vector<1x2xf32> to vector<2x2xf32>
    %73 = arith.addf %70, %72 : vector<2x2xf32>
    %c0_38 = arith.constant 0 : index
    %c0_39 = arith.constant 0 : index
    %74 = vector.load %arg6[%c0_38, %c0_39] : memref<2x2xf32, #tpu.memory_space<vmem>>, vector<2x2xf32>
    tpu.vector_store %arg6[%c0_38, %c0_39], %73 {strides = array<i32>} : memref<2x2xf32, #tpu.memory_space<vmem>>, vector<2x2xf32>,
    return
  }
}

</mosaic_0001>

<llo_original>
// kernel: critic_forward.1
$region0: #{critic_forward.1}
  #allocation0 [shape = 'u32[]', space=smem, size = 0x4, offset = 0x4, fixed_abs, tag = 'smem constant byte address 0x4 - core index']
  #allocation1 [shape = 'u32[144,128]{1,0:T(1,128)}', space=vmem, size = 0x12000, scoped, tag = 'internal scratch']
  %s0 = inlined_call_operand.vmem [shape: f32[8,220], index: 0, kind: input, shape index: {}]
  %s1 = inlined_call_operand.hbm [shape: f32[2,8], index: 1, kind: input, shape index: {}]
  %s2 = inlined_call_operand.hbm [shape: f32[2,2], index: 2, kind: input, shape index: {}]
  %s3 = inlined_call_operand.hbm [shape: f32[220,1280], index: 3, kind: input, shape index: {}]
  %s4 = inlined_call_operand.hbm [shape: f32[368,128], index: 4, kind: input, shape index: {}]
  %s5 = inlined_call_operand.hbm [shape: f32[16,128], index: 5, kind: input, shape index: {}]
  %s6 = inlined_call_operand.vmem [shape: f32[2,2], index: 6, kind: output, shape index: {}]
  %s7 = sld [smem:[#allocation0]]
  $region54: #{critic_forward.1} parent=0
    _
  %s9 = ssub.s32 1, %s7
  %s10 = scalar_select 0, %s9, %s7
  $region1: #{critic_forward.1} parent=0
    #allocation2 [shape = 'u8[1024]{0}', space=vmem, size = 0x400, scoped, tag = 'input window, operand 1, single buffered']
    #allocation3 [shape = 's32[1]{0}', space=sflag, size = 0x4, scoped, tag = 'scoped memory for critic_forward.1']
    #allocation4 [shape = 'u8[1024]{0}', space=vmem, size = 0x400, scoped, tag = 'input window, operand 2, single buffered']
    #allocation5 [shape = 's32[1]{0}', space=sflag, size = 0x4, scoped, tag = 'scoped memory for critic_forward.1']
    #allocation6 [shape = 'u8[1146880]{0}', space=vmem, size = 0x118000, scoped, tag = 'input window, operand 3, single buffered']
    #allocation7 [shape = 'u8[188416]{0}', space=vmem, size = 0x2e000, scoped, tag = 'input window, operand 4, single buffered']
    #allocation8 [shape = 's32[1]{0}', space=sflag, size = 0x4, scoped, tag = 'scoped memory for critic_forward.1']
    #allocation9 [shape = 'u8[8192]{0}', space=vmem, size = 0x2000, scoped, tag = 'input window, operand 5, single buffered']
    %11 = vsyncpa [#allocation3], 0
    %12 = vsyncpa [#allocation5], 0
    %13 = vsyncpa [#allocation8], 0
    // Predicated region
    $region2: #{critic_forward.1} parent=1 // pred_check
      _
    $region3: #{critic_forward.1} parent=1 // pred_check_branch
      %15 = sbr.rel (0) target = $region5
    $region4: #{critic_forward.1} parent=1 // pred_region
      _
    $region5: #{critic_forward.1} parent=1 // pred_fallthru
      _
    // Predicated region
    $region6: #{critic_forward.1} parent=1 // pred_check
      _
    $region7: #{critic_forward.1} parent=1 // pred_check_branch
      %17 = sbr.rel (0) target = $region9
    $region8: #{critic_forward.1} parent=1 // pred_region
      %s19 = ssub.s32 32, 32
      %20 = vsyncadd [#allocation3], %s19
      %s22 = sshll.u32 [#allocation2], 4
      %s23 = int_to_ptr.vmem [resolvable:$true] %s22
      %25 = dma.hbm_to_vmem [thread:$0]  %s1, 32, %s23, [#allocation3]
    $region9: #{critic_forward.1} parent=1 // pred_fallthru
      _
    // Predicated region
    $region10: #{critic_forward.1} parent=1 // pred_check
      _
    $region11: #{critic_forward.1} parent=1 // pred_check_branch
      %27 = sbr.rel (0) target = $region13
    $region12: #{critic_forward.1} parent=1 // pred_region
      %s29 = ssub.s32 32, 32
      %30 = vsyncadd [#allocation5], %s29
      %s32 = sshll.u32 [#allocation4], 4
      %s33 = int_to_ptr.vmem [resolvable:$true] %s32
      %35 = dma.hbm_to_vmem [thread:$0]  %s2, 32, %s33, [#allocation5]
    $region13: #{critic_forward.1} parent=1 // pred_fallthru
      _
    // Predicated region
    $region14: #{critic_forward.1} parent=1 // pred_check
      _
    $region15: #{critic_forward.1} parent=1 // pred_check_branch
      %37 = sbr.rel (0) target = $region17
    $region16: #{critic_forward.1} parent=1 // pred_region
      %s39 = ssub.s32 35840, 35840
      %40 = vsyncadd [#allocation5], %s39
      %s41 = sshll.u32 [#allocation6], 4
      %s42 = int_to_ptr.vmem [resolvable:$true] %s41
      %47 = dma.hbm_to_vmem [thread:$0]  %s3, 35840, %s42, [#allocation5], 1280, 1280, 80
    $region17: #{critic_forward.1} parent=1 // pred_fallthru
      _
    // Predicated region
    $region18: #{critic_forward.1} parent=1 // pred_check
      _
    $region19: #{critic_forward.1} parent=1 // pred_check_branch
      %49 = sbr.rel (0) target = $region21
    $region20: #{critic_forward.1} parent=1 // pred_region
      %s51 = ssub.s32 5888, 5888
      %52 = vsyncadd [#allocation8], %s51
      %s53 = sshll.u32 [#allocation7], 4
      %s54 = int_to_ptr.vmem [resolvable:$true] %s53
      %59 = dma.hbm_to_vmem [thread:$0]  %s4, 5888, %s54, [#allocation8], 128, 128, 8
    $region21: #{critic_forward.1} parent=1 // pred_fallthru
      _
    // Predicated region
    $region22: #{critic_forward.1} parent=1 // pred_check
      _
    $region23: #{critic_forward.1} parent=1 // pred_check_branch
      %61 = sbr.rel (0) target = $region25
    $region24: #{critic_forward.1} parent=1 // pred_region
      %s63 = ssub.s32 256, 256
      %64 = vsyncadd [#allocation8], %s63
      %s65 = sshll.u32 [#allocation9], 4
      %s66 = int_to_ptr.vmem [resolvable:$true] %s65
      %71 = dma.hbm_to_vmem [thread:$0]  %s5, 256, %s66, [#allocation8], 128, 128, 8
    $region25: #{critic_forward.1} parent=1 // pred_fallthru
      _
    // Predicated region
    $region26: #{critic_forward.1} parent=1 // pred_check
      _
    $region27: #{critic_forward.1} parent=1 // pred_check_branch
      %73 = sbr.rel (0) target = $region29
    $region28: #{critic_forward.1} parent=1 // pred_region
      %74 = dma.done [#allocation3], 32
    $region29: #{critic_forward.1} parent=1 // pred_fallthru
      _
    // Predicated region
    $region30: #{critic_forward.1} parent=1 // pred_check
      _
    $region31: #{critic_forward.1} parent=1 // pred_check_branch
      %76 = sbr.rel (0) target = $region33
    $region32: #{critic_forward.1} parent=1 // pred_region
      %77 = dma.done [#allocation5], 32
    $region33: #{critic_forward.1} parent=1 // pred_fallthru
      _
    // Predicated region
    $region34: #{critic_forward.1} parent=1 // pred_check
      _
    $region35: #{critic_forward.1} parent=1 // pred_check_branch
      %79 = sbr.rel (0) target = $region37
    $region36: #{critic_forward.1} parent=1 // pred_region
      %80 = dma.done [#allocation5], 35840
    $region37: #{critic_forward.1} parent=1 // pred_fallthru
      _
    // Predicated region
    $region38: #{critic_forward.1} parent=1 // pred_check
      _
    $region39: #{critic_forward.1} parent=1 // pred_check_branch
      %82 = sbr.rel (0) target = $region41
    $region40: #{critic_forward.1} parent=1 // pred_region
      %83 = dma.done [#allocation8], 5888
    $region41: #{critic_forward.1} parent=1 // pred_fallthru
      _
    // Predicated region
    $region42: #{critic_forward.1} parent=1 // pred_check
      _
    $region43: #{critic_forward.1} parent=1 // pred_check_branch
      %85 = sbr.rel (0) target = $region45
    $region44: #{critic_forward.1} parent=1 // pred_region
      %86 = dma.done [#allocation8], 256
    $region45: #{critic_forward.1} parent=1 // pred_fallthru
      _
    %v87 = vld [vmem:[#allocation9 + $0x8] sm:$0xff]
    %v88 = vld [vmem:[%s0] sm:$0xff]
    %v89 = vld [vmem:[%s0 + $0x8] sm:$0xff]
    %vm90 = vcmask 64512
    %v92 = vsel %vm90, %v87, 0
    %94 = vmatprep.subr.mxu0 %v89
    %95 = vmatpush1.msra.mxu0 %v88
    %96 = vmatprep.subr.mxu0 0.0
    %97 = vmatpush1.msra.mxu0 0.0
    %98 = vmatprep.subr.mxu0 0.0
    %99 = vmatpush1.msra.mxu0 0.0
    %100 = vmatprep.subr.mxu0 0.0
    %101 = vmatpush1.msra.mxu0 0.0
    %102 = vmatprep.subr.mxu0 0.0
    %103 = vmatpush1.msra.mxu0 0.0
    %104 = vmatprep.subr.mxu0 0.0
    %105 = vmatpush1.msra.mxu0 0.0
    %106 = vmatprep.subr.mxu0 0.0
    %107 = vmatpush1.msra.mxu0 0.0
    %108 = vmatprep.subr.mxu0 0.0
    %109 = vmatpush1.msra.mxu0 0.0
    %110 = vmatprep.subr.mxu0 0.0
    %111 = vmatpush1.msra.mxu0 0.0
    %112 = vmatprep.subr.mxu0 0.0
    %113 = vmatpush1.msra.mxu0 0.0
    %114 = vmatprep.subr.mxu0 0.0
    %115 = vmatpush1.msra.mxu0 0.0
    %116 = vmatprep.subr.mxu0 0.0
    %117 = vmatpush1.msra.mxu0 0.0
    %118 = vmatprep.subr.mxu0 0.0
    %119 = vmatpush1.msra.mxu0 0.0
    %120 = vmatprep.subr.mxu0 0.0
    %121 = vmatpush1.msra.mxu0 0.0
    %122 = vmatprep.subr.mxu0 0.0
    %123 = vmatpush1.msra.mxu0 0.0
    %124 = vmatprep.subr.mxu0 0.0
    %125 = vmatpush1.msra.mxu0 0.0
    %126 = vmatprep.subr.mxu0 0.0
    %127 = vmatpush1.msra.mxu0 0.0
    %128 = vmatprep.subr.mxu0 0.0
    %129 = vmatpush1.msra.mxu0 0.0
    %130 = vmatprep.subr.mxu0 0.0
    %131 = vmatpush1.msra.mxu0 0.0
    %132 = vmatprep.subr.mxu0 0.0
    %133 = vmatpush1.msra.mxu0 0.0
    %134 = vmatprep.subr.mxu0 0.0
    %135 = vmatpush1.msra.mxu0 0.0
    %136 = vmatprep.subr.mxu0 0.0
    %137 = vmatpush1.msra.mxu0 0.0
    %138 = vmatprep.subr.mxu0 0.0
    %139 = vmatpush1.msra.mxu0 0.0
    %140 = vmatprep.subr.mxu0 0.0
    %141 = vmatpush1.msra.mxu0 0.0
    %142 = vmatprep.subr.mxu0 0.0
    %143 = vmatpush1.msra.mxu0 0.0
    %144 = vmatprep.subr.mxu0 0.0
    %145 = vmatpush1.msra.mxu0 0.0
    %146 = vmatprep.subr.mxu0 0.0
    %147 = vmatpush1.msra.mxu0 0.0
    %148 = vmatprep.subr.mxu0 0.0
    %149 = vmatpush1.msra.mxu0 0.0
    %150 = vmatprep.subr.mxu0 0.0
    %151 = vmatpush1.msra.mxu0 0.0
    %152 = vmatprep.subr.mxu0 0.0
    %153 = vmatpush1.msra.mxu0 0.0
    %154 = vmatprep.subr.mxu0 0.0
    %155 = vmatpush1.msra.mxu0 0.0
    %156 = vmatprep.subr.mxu0 0.0
    %157 = vmatpush1.msra.mxu0 0.0
    %158 = vmatprep.mubr.f32.mxu0 0.0
    %159 = vmatmul.mubr.f32.gmra.mrb[0].mxu0 %v92
    %v160 = vpop.f32.mrb[0].mxu0
    %v161 = vadd.f32 0.0, %v160
    %v162 = vpop.f32.mrb[0].mxu0
    %v163 = vadd.f32 0.0, %v162
    %164 = vdwg.mxu0
    %v165 = vld [vmem:[#allocation6] sm:$0xff]
    %v166 = vld [vmem:[#allocation6 + $0x8] sm:$0xff]
    %v167 = vld [vmem:[#allocation6 + $0x10] sm:$0xff]
    %v168 = vld [vmem:[#allocation6 + $0x18] sm:$0xff]
    %v169 = vld [vmem:[#allocation6 + $0x20] sm:$0xff]
    %v170 = vld [vmem:[#allocation6 + $0x28] sm:$0xff]
    %v171 = vld [vmem:[#allocation6 + $0x30] sm:$0xff]
    %v172 = vld [vmem:[#allocation6 + $0x38] sm:$0xff]
    %v173 = vld [vmem:[#allocation6 + $0x40] sm:$0xff]
    %v174 = vld [vmem:[#allocation6 + $0x48] sm:$0xff]
    %v175 = vld [vmem:[#allocation6 + $0x50] sm:$0xff]
    %v176 = vld [vmem:[#allocation6 + $0x58] sm:$0xff]
    %v177 = vld [vmem:[#allocation6 + $0x60] sm:$0xff]
    %v178 = vld [vmem:[#allocation6 + $0x68] sm:$0xff]
    %v179 = vld [vmem:[#allocation6 + $0x70] sm:$0xff]
    %v180 = vld [vmem:[#allocation6 + $0x78] sm:$0xff]
    %v181 = vld [vmem:[#allocation6 + $0x80] sm:$0xff]
    %v182 = vld [vmem:[#allocation6 + $0x88] sm:$0xff]
    %v183 = vld [vmem:[#allocation6 + $0x90] sm:$0xff]
    %v184 = vld [vmem:[#allocation6 + $0x98] sm:$0xff]
    %v185 = vld [vmem:[#allocation6 + $0xa0] sm:$0xff]
    %v186 = vld [vmem:[#allocation6 + $0xa8] sm:$0xff]
    %v187 = vld [vmem:[#allocation6 + $0xb0] sm:$0xff]
    %v188 = vld [vmem:[#allocation6 + $0xb8] sm:$0xff]
    %v189 = vld [vmem:[#allocation6 + $0xc0] sm:$0xff]
    %v190 = vld [vmem:[#allocation6 + $0xc8] sm:$0xff]
    %v191 = vld [vmem:[#allocation6 + $0xd0] sm:$0xff]
    %v192 = vld [vmem:[#allocation6 + $0xd8] sm:$0xff]
    %v193 = vld [vmem:[#allocation6 + $0xe0] sm:$0xff]
    %v194 = vld [vmem:[#allocation6 + $0xe8] sm:$0xff]
    %v195 = vld [vmem:[#allocation6 + $0xf0] sm:$0xff]
    %v196 = vld [vmem:[#allocation6 + $0xf8] sm:$0xff]
    %v197 = vld [vmem:[#allocation6 + $0x100] sm:$0xff]
    %v198 = vld [vmem:[#allocation6 + $0x108] sm:$0xff]
    %v199 = vld [vmem:[#allocation6 + $0x110] sm:$0xff]
    %v200 = vld [vmem:[#allocation6 + $0x118] sm:$0xff]
    %v201 = vld [vmem:[#allocation6 + $0x120] sm:$0xff]
    %v202 = vld [vmem:[#allocation6 + $0x128] sm:$0xff]
    %v203 = vld [vmem:[#allocation6 + $0x130] sm:$0xff]
    %v204 = vld [vmem:[#allocation6 + $0x138] sm:$0xff]
    %v205 = vld [vmem:[#allocation6 + $0x140] sm:$0xff]
    %v206 = vld [vmem:[#allocation6 + $0x148] sm:$0xff]
    %v207 = vld [vmem:[#allocation6 + $0x150] sm:$0xff]
    %v208 = vld [vmem:[#allocation6 + $0x158] sm:$0xff]
    %v209 = vld [vmem:[#allocation6 + $0x160] sm:$0xff]
    %v210 = vld [vmem:[#allocation6 + $0x168] sm:$0xff]
    %v211 = vld [vmem:[#allocation6 + $0x170] sm:$0xff]
    %v212 = vld [vmem:[#allocation6 + $0x178] sm:$0xff]
    %v213 = vld [vmem:[#allocation6 + $0x180] sm:$0xff]
    %v214 = vld [vmem:[#allocation6 + $0x188] sm:$0xff]
    %v215 = vld [vmem:[#allocation6 + $0x190] sm:$0xff]
    %v216 = vld [vmem:[#allocation6 + $0x198] sm:$0xff]
    %v217 = vld [vmem:[#allocation6 + $0x1a0] sm:$0xff]
    %v218 = vld [vmem:[#allocation6 + $0x1a8] sm:$0xff]
    %v219 = vld [vmem:[#allocation6 + $0x1b0] sm:$0xff]
    %v220 = vld [vmem:[#allocation6 + $0x1b8] sm:$0xff]
    %v221 = vld [vmem:[#allocation6 + $0x1c0] sm:$0xff]
    %v222 = vld [vmem:[#allocation6 + $0x1c8] sm:$0xff]
    %v223 = vld [vmem:[#allocation6 + $0x1d0] sm:$0xff]
    %v224 = vld [vmem:[#allocation6 + $0x1d8] sm:$0xff]
    %v225 = vld [vmem:[#allocation6 + $0x1e0] sm:$0xff]
    %v226 = vld [vmem:[#allocation6 + $0x1e8] sm:$0xff]
    %v227 = vld [vmem:[#allocation6 + $0x1f0] sm:$0xff]
    %v228 = vld [vmem:[#allocation6 + $0x1f8] sm:$0xff]
    %v229 = vld [vmem:[#allocation6 + $0x200] sm:$0xff]
    %v230 = vld [vmem:[#allocation6 + $0x208] sm:$0xff]
    %v231 = vld [vmem:[#allocation6 + $0x210] sm:$0xff]
    %v232 = vld [vmem:[#allocation6 + $0x218] sm:$0xff]
    %v233 = vld [vmem:[#allocation6 + $0x220] sm:$0xff]
    %v234 = vld [vmem:[#allocation6 + $0x228] sm:$0xff]
    %v235 = vld [vmem:[#allocation6 + $0x230] sm:$0xff]
    %v236 = vld [vmem:[#allocation6 + $0x238] sm:$0xff]
    %v237 = vld [vmem:[#allocation6 + $0x240] sm:$0xff]
    %v238 = vld [vmem:[#allocation6 + $0x248] sm:$0xff]
    %v239 = vld [vmem:[#allocation6 + $0x250] sm:$0xff]
    %v240 = vld [vmem:[#allocation6 + $0x258] sm:$0xff]
    %v241 = vld [vmem:[#allocation6 + $0x260] sm:$0xff]
    %v242 = vld [vmem:[#allocation6 + $0x268] sm:$0xff]
    %v243 = vld [vmem:[#allocation6 + $0x270] sm:$0xff]
    %v244 = vld [vmem:[#allocation6 + $0x278] sm:$0xff]
    %v245 = vld [vmem:[#allocation6 + $0x280] sm:$0xff]
    %v246 = vld [vmem:[#allocation6 + $0x288] sm:$0xff]
    %v247 = vld [vmem:[#allocation6 + $0x290] sm:$0xff]
    %v248 = vld [vmem:[#allocation6 + $0x298] sm:$0xff]
    %v249 = vld [vmem:[#allocation6 + $0x2a0] sm:$0xff]
    %v250 = vld [vmem:[#allocation6 + $0x2a8] sm:$0xff]
    %v251 = vld [vmem:[#allocation6 + $0x2b0] sm:$0xff]
    %v252 = vld [vmem:[#allocation6 + $0x2b8] sm:$0xff]
    %v253 = vld [vmem:[#allocation6 + $0x2c0] sm:$0xff]
    %v254 = vld [vmem:[#allocation6 + $0x2c8] sm:$0xff]
    %v255 = vld [vmem:[#allocation6 + $0x2d0] sm:$0xff]
    %v256 = vld [vmem:[#allocation6 + $0x2d8] sm:$0xff]
    %v257 = vld [vmem:[#allocation6 + $0x2e0] sm:$0xff]
    %v258 = vld [vmem:[#allocation6 + $0x2e8] sm:$0xff]
    %v259 = vld [vmem:[#allocation6 + $0x2f0] sm:$0xff]
    %v260 = vld [vmem:[#allocation6 + $0x2f8] sm:$0xff]
    %v261 = vld [vmem:[#allocation6 + $0x300] sm:$0xff]
    %v262 = vld [vmem:[#allocation6 + $0x308] sm:$0xff]
    %v263 = vld [vmem:[#allocation6 + $0x310] sm:$0xff]
    %v264 = vld [vmem:[#allocation6 + $0x318] sm:$0xff]
    %v265 = vld [vmem:[#allocation6 + $0x320] sm:$0xff]
    %v266 = vld [vmem:[#allocation6 + $0x328] sm:$0xff]
    %v267 = vld [vmem:[#allocation6 + $0x330] sm:$0xff]
    %v268 = vld [vmem:[#allocation6 + $0x338] sm:$0xff]
    %v269 = vld [vmem:[#allocation6 + $0x340] sm:$0xff]
    %v270 = vld [vmem:[#allocation6 + $0x348] sm:$0xff]
    %v271 = vld [vmem:[#allocation6 + $0x350] sm:$0xff]
    %v272 = vld [vmem:[#allocation6 + $0x358] sm:$0xff]
    %v273 = vld [vmem:[#allocation6 + $0x360] sm:$0xff]
    %v274 = vld [vmem:[#allocation6 + $0x368] sm:$0xff]
    %v275 = vld [vmem:[#allocation6 + $0x370] sm:$0xff]
    %v276 = vld [vmem:[#allocation6 + $0x378] sm:$0xff]
    %v277 = vld [vmem:[#allocation6 + $0x380] sm:$0xff]
    %v278 = vld [vmem:[#allocation6 + $0x388] sm:$0xff]
    %v279 = vld [vmem:[#allocation6 + $0x390] sm:$0xff]
    %v280 = vld [vmem:[#allocation6 + $0x398] sm:$0xff]
    %v281 = vld [vmem:[#allocation6 + $0x3a0] sm:$0xff]
    %v282 = vld [vmem:[#allocation6 + $0x3a8] sm:$0xff]
    %v283 = vld [vmem:[#allocation6 + $0x3b0] sm:$0xff]
    %v284 = vld [vmem:[#allocation6 + $0x3b8] sm:$0xff]
    %v285 = vld [vmem:[#allocation6 + $0x3c0] sm:$0xff]
    %v286 = vld [vmem:[#allocation6 + $0x3c8] sm:$0xff]
    %v287 = vld [vmem:[#allocation6 + $0x3d0] sm:$0xff]
    %v288 = vld [vmem:[#allocation6 + $0x3d8] sm:$0xff]
    %v289 = vld [vmem:[#allocation6 + $0x3e0] sm:$0xff]
    %v290 = vld [vmem:[#allocation6 + $0x3e8] sm:$0xff]
    %v291 = vld [vmem:[#allocation6 + $0x3f0] sm:$0xff]
    %v292 = vld [vmem:[#allocation6 + $0x3f8] sm:$0xff]
    %v293 = vld [vmem:[#allocation6 + $0x400] sm:$0xff]
    %v294 = vld [vmem:[#allocation6 + $0x408] sm:$0xff]
    %v295 = vld [vmem:[#allocation6 + $0x410] sm:$0xff]
    %v296 = vld [vmem:[#allocation6 + $0x418] sm:$0xff]
    %v297 = vld [vmem:[#allocation6 + $0x420] sm:$0xff]
    %v298 = vld [vmem:[#allocation6 + $0x428] sm:$0xff]
    %v299 = vld [vmem:[#allocation6 + $0x430] sm:$0xff]
    %v300 = vld [vmem:[#allocation6 + $0x438] sm:$0xff]
    %v301 = vld [vmem:[#allocation6 + $0x440] sm:$0xff]
    %v302 = vld [vmem:[#allocation6 + $0x448] sm:$0xff]
    %v303 = vld [vmem:[#allocation6 + $0x450] sm:$0xff]
    %v304 = vld [vmem:[#allocation6 + $0x458] sm:$0xff]
    %v305 = vld [vmem:[#allocation6 + $0x460] sm:$0xff]
    %v306 = vld [vmem:[#allocation6 + $0x468] sm:$0xff]
    %v307 = vld [vmem:[#allocation6 + $0x470] sm:$0xff]
    %v308 = vld [vmem:[#allocation6 + $0x478] sm:$0xff]
    %v309 = vld [vmem:[#allocation6 + $0x480] sm:$0xff]
    %v310 = vld [vmem:[#allocation6 + $0x488] sm:$0xff]
    %v311 = vld [vmem:[#allocation6 + $0x490] sm:$0xff]
    %v312 = vld [vmem:[#allocation6 + $0x498] sm:$0xff]
    %v313 = vld [vmem:[#allocation6 + $0x4a0] sm:$0xff]
    %v314 = vld [vmem:[#allocation6 + $0x4a8] sm:$0xff]
    %v315 = vld [vmem:[#allocation6 + $0x4b0] sm:$0xff]
    %v316 = vld [vmem:[#allocation6 + $0x4b8] sm:$0xff]
    %v317 = vld [vmem:[#allocation6 + $0x4c0] sm:$0xff]
    %v318 = vld [vmem:[#allocation6 + $0x4c8] sm:$0xff]
    %v319 = vld [vmem:[#allocation6 + $0x4d0] sm:$0xff]
    %v320 = vld [vmem:[#allocation6 + $0x4d8] sm:$0xff]
    %v321 = vld [vmem:[#allocation6 + $0x4e0] sm:$0xff]
    %v322 = vld [vmem:[#allocation6 + $0x4e8] sm:$0xff]
    %v323 = vld [vmem:[#allocation6 + $0x4f0] sm:$0xff]
    %v324 = vld [vmem:[#allocation6 + $0x4f8] sm:$0xff]
    %v325 = vld [vmem:[#allocation6 + $0x500] sm:$0xff]
    %v326 = vld [vmem:[#allocation6 + $0x508] sm:$0xff]
    %v327 = vld [vmem:[#allocation6 + $0x510] sm:$0xff]
    %v328 = vld [vmem:[#allocation6 + $0x518] sm:$0xff]
    %v329 = vld [vmem:[#allocation6 + $0x520] sm:$0xff]
    %v330 = vld [vmem:[#allocation6 + $0x528] sm:$0xff]
    %v331 = vld [vmem:[#allocation6 + $0x530] sm:$0xff]
    %v332 = vld [vmem:[#allocation6 + $0x538] sm:$0xff]
    %v333 = vld [vmem:[#allocation6 + $0x540] sm:$0xff]
    %v334 = vld [vmem:[#allocation6 + $0x548] sm:$0xff]
    %v335 = vld [vmem:[#allocation6 + $0x550] sm:$0xff]
    %v336 = vld [vmem:[#allocation6 + $0x558] sm:$0xff]
    %v337 = vld [vmem:[#allocation6 + $0x560] sm:$0xff]
    %v338 = vld [vmem:[#allocation6 + $0x568] sm:$0xff]
    %v339 = vld [vmem:[#allocation6 + $0x570] sm:$0xff]
    %v340 = vld [vmem:[#allocation6 + $0x578] sm:$0xff]
    %v341 = vld [vmem:[#allocation6 + $0x580] sm:$0xff]
    %v342 = vld [vmem:[#allocation6 + $0x588] sm:$0xff]
    %v343 = vld [vmem:[#allocation6 + $0x590] sm:$0xff]
    %v344 = vld [vmem:[#allocation6 + $0x598] sm:$0xff]
    %v345 = vld [vmem:[#allocation6 + $0x5a0] sm:$0xff]
    %v346 = vld [vmem:[#allocation6 + $0x5a8] sm:$0xff]
    %v347 = vld [vmem:[#allocation6 + $0x5b0] sm:$0xff]
    %v348 = vld [vmem:[#allocation6 + $0x5b8] sm:$0xff]
    %v349 = vld [vmem:[#allocation6 + $0x5c0] sm:$0xff]
    %v350 = vld [vmem:[#allocation6 + $0x5c8] sm:$0xff]
    %v351 = vld [vmem:[#allocation6 + $0x5d0] sm:$0xff]
    %v352 = vld [vmem:[#allocation6 + $0x5d8] sm:$0xff]
    %v353 = vld [vmem:[#allocation6 + $0x5e0] sm:$0xff]
    %v354 = vld [vmem:[#allocation6 + $0x5e8] sm:$0xff]
    %v355 = vld [vmem:[#allocation6 + $0x5f0] sm:$0xff]
    %v356 = vld [vmem:[#allocation6 + $0x5f8] sm:$0xff]
    %v357 = vld [vmem:[#allocation6 + $0x600] sm:$0xff]
    %v358 = vld [vmem:[#allocation6 + $0x608] sm:$0xff]
    %v359 = vld [vmem:[#allocation6 + $0x610] sm:$0xff]
    %v360 = vld [vmem:[#allocation6 + $0x618] sm:$0xff]
    %v361 = vld [vmem:[#allocation6 + $0x620] sm:$0xff]
    %v362 = vld [vmem:[#allocation6 + $0x628] sm:$0xff]
    %v363 = vld [vmem:[#allocation6 + $0x630] sm:$0xff]
    %v364 = vld [vmem:[#allocation6 + $0x638] sm:$0xff]
    %v365 = vld [vmem:[#allocation6 + $0x640] sm:$0xff]
    %v366 = vld [vmem:[#allocation6 + $0x648] sm:$0xff]
    %v367 = vld [vmem:[#allocation6 + $0x650] sm:$0xff]
    %v368 = vld [vmem:[#allocation6 + $0x658] sm:$0xff]
    %v369 = vld [vmem:[#allocation6 + $0x660] sm:$0xff]
    %v370 = vld [vmem:[#allocation6 + $0x668] sm:$0xff]
    %v371 = vld [vmem:[#allocation6 + $0x670] sm:$0xff]
    %v372 = vld [vmem:[#allocation6 + $0x678] sm:$0xff]
    %v373 = vld [vmem:[#allocation6 + $0x680] sm:$0xff]
    %v374 = vld [vmem:[#allocation6 + $0x688] sm:$0xff]
    %v375 = vld [vmem:[#allocation6 + $0x690] sm:$0xff]
    %v376 = vld [vmem:[#allocation6 + $0x698] sm:$0xff]
    %v377 = vld [vmem:[#allocation6 + $0x6a0] sm:$0xff]
    %v378 = vld [vmem:[#allocation6 + $0x6a8] sm:$0xff]
    %v379 = vld [vmem:[#allocation6 + $0x6b0] sm:$0xff]
    %v380 = vld [vmem:[#allocation6 + $0x6b8] sm:$0xff]
    %v381 = vld [vmem:[#allocation6 + $0x6c0] sm:$0xff]
    %v382 = vld [vmem:[#allocation6 + $0x6c8] sm:$0xff]
    %v383 = vld [vmem:[#allocation6 + $0x6d0] sm:$0xff]
    %v384 = vld [vmem:[#allocation6 + $0x6d8] sm:$0xff]
    %v385 = vld [vmem:[#allocation6 + $0x6e0] sm:$0xff]
    %v386 = vld [vmem:[#allocation6 + $0x6e8] sm:$0xff]
    %v387 = vld [vmem:[#allocation6 + $0x6f0] sm:$0xff]
    %v388 = vld [vmem:[#allocation6 + $0x6f8] sm:$0xff]
    %v389 = vld [vmem:[#allocation6 + $0x700] sm:$0xff]
    %v390 = vld [vmem:[#allocation6 + $0x708] sm:$0xff]
    %v391 = vld [vmem:[#allocation6 + $0x710] sm:$0xff]
    %v392 = vld [vmem:[#allocation6 + $0x718] sm:$0xff]
    %v393 = vld [vmem:[#allocation6 + $0x720] sm:$0xff]
    %v394 = vld [vmem:[#allocation6 + $0x728] sm:$0xff]
    %v395 = vld [vmem:[#allocation6 + $0x730] sm:$0xff]
    %v396 = vld [vmem:[#allocation6 + $0x738] sm:$0xff]
    %v397 = vld [vmem:[#allocation6 + $0x740] sm:$0xff]
    %v398 = vld [vmem:[#allocation6 + $0x748] sm:$0xff]
    %v399 = vld [vmem:[#allocation6 + $0x750] sm:$0xff]
    %v400 = vld [vmem:[#allocation6 + $0x758] sm:$0xff]
    %v401 = vld [vmem:[#allocation6 + $0x760] sm:$0xff]
    %v402 = vld [vmem:[#allocation6 + $0x768] sm:$0xff]
    %v403 = vld [vmem:[#allocation6 + $0x770] sm:$0xff]
    %v404 = vld [vmem:[#allocation6 + $0x778] sm:$0xff]
    %v405 = vld [vmem:[#allocation6 + $0x780] sm:$0xff]
    %v406 = vld [vmem:[#allocation6 + $0x788] sm:$0xff]
    %v407 = vld [vmem:[#allocation6 + $0x790] sm:$0xff]
    %v408 = vld [vmem:[#allocation6 + $0x798] sm:$0xff]
    %v409 = vld [vmem:[#allocation6 + $0x7a0] sm:$0xff]
    %v410 = vld [vmem:[#allocation6 + $0x7a8] sm:$0xff]
    %v411 = vld [vmem:[#allocation6 + $0x7b0] sm:$0xff]
    %v412 = vld [vmem:[#allocation6 + $0x7b8] sm:$0xff]
    %v413 = vld [vmem:[#allocation6 + $0x7c0] sm:$0xff]
    %v414 = vld [vmem:[#allocation6 + $0x7c8] sm:$0xff]
    %v415 = vld [vmem:[#allocation6 + $0x7d0] sm:$0xff]
    %v416 = vld [vmem:[#allocation6 + $0x7d8] sm:$0xff]
    %v417 = vld [vmem:[#allocation6 + $0x7e0] sm:$0xff]
    %v418 = vld [vmem:[#allocation6 + $0x7e8] sm:$0xff]
    %v419 = vld [vmem:[#allocation6 + $0x7f0] sm:$0xff]
    %v420 = vld [vmem:[#allocation6 + $0x7f8] sm:$0xff]
    %v421 = vld [vmem:[#allocation6 + $0x800] sm:$0xff]
    %v422 = vld [vmem:[#allocation6 + $0x808] sm:$0xff]
    %v423 = vld [vmem:[#allocation6 + $0x810] sm:$0xff]
    %v424 = vld [vmem:[#allocation6 + $0x818] sm:$0xff]
    %v425 = vld [vmem:[#allocation6 + $0x820] sm:$0xff]
    %v426 = vld [vmem:[#allocation6 + $0x828] sm:$0xff]
    %v427 = vld [vmem:[#allocation6 + $0x830] sm:$0xff]
    %v428 = vld [vmem:[#allocation6 + $0x838] sm:$0xff]
    %v429 = vld [vmem:[#allocation6 + $0x840] sm:$0xff]
    %v430 = vld [vmem:[#allocation6 + $0x848] sm:$0xff]
    %v431 = vld [vmem:[#allocation6 + $0x850] sm:$0xff]
    %v432 = vld [vmem:[#allocation6 + $0x858] sm:$0xff]
    %v433 = vld [vmem:[#allocation6 + $0x860] sm:$0xff]
    %v434 = vld [vmem:[#allocation6 + $0x868] sm:$0xff]
    %v435 = vld [vmem:[#allocation6 + $0x870] sm:$0xf]
    %v436 = vld [vmem:[#allocation6 + $0x878] sm:$0xf]
    %v437 = vld [vmem:[#allocation6 + $0x880] sm:$0xf]
    %v438 = vld [vmem:[#allocation6 + $0x888] sm:$0xf]
    %v439 = vld [vmem:[#allocation6 + $0x890] sm:$0xf]
    %v440 = vld [vmem:[#allocation6 + $0x898] sm:$0xf]
    %v441 = vld [vmem:[#allocation6 + $0x8a0] sm:$0xf]
    %v442 = vld [vmem:[#allocation6 + $0x8a8] sm:$0xf]
    %v443 = vld [vmem:[#allocation6 + $0x8b0] sm:$0xf]
    %v444 = vld [vmem:[#allocation6 + $0x8b8] sm:$0xf]
    %vm445 = vcmask 752640
    %v447 = vsel %vm445, %v163, 0
    %vm449 = vcmask 1043456
    %v451 = vsel %vm449, %v435, 0
    %v454 = vsel %vm449, %v436, 0
    %v457 = vsel %vm449, %v437, 0
    %v460 = vsel %vm449, %v438, 0
    %v463 = vsel %vm449, %v439, 0
    %v466 = vsel %vm449, %v440, 0
    %v469 = vsel %vm449, %v441, 0
    %v472 = vsel %vm449, %v442, 0
    %v475 = vsel %vm449, %v443, 0
    %v478 = vsel %vm449, %v444, 0
    %480 = vmatprep.subr.mxu0 %v166
    %481 = vmatpush1.msra.mxu0 %v165
    %482 = vmatprep.subr.mxu0 %v176
    %483 = vmatpush1.msra.mxu0 %v175
    %484 = vmatprep.subr.mxu0 %v186
    %485 = vmatpush1.msra.mxu0 %v185
    %486 = vmatprep.subr.mxu0 %v196
    %487 = vmatpush1.msra.mxu0 %v195
    %488 = vmatprep.subr.mxu0 %v206
    %489 = vmatpush1.msra.mxu0 %v205
    %490 = vmatprep.subr.mxu0 %v216
    %491 = vmatpush1.msra.mxu0 %v215
    %492 = vmatprep.subr.mxu0 %v226
    %493 = vmatpush1.msra.mxu0 %v225
    %494 = vmatprep.subr.mxu0 %v236
    %495 = vmatpush1.msra.mxu0 %v235
    %496 = vmatprep.subr.mxu0 %v246
    %497 = vmatpush1.msra.mxu0 %v245
    %498 = vmatprep.subr.mxu0 %v256
    %499 = vmatpush1.msra.mxu0 %v255
    %500 = vmatprep.subr.mxu0 %v266
    %501 = vmatpush1.msra.mxu0 %v265
    %502 = vmatprep.subr.mxu0 %v276
    %503 = vmatpush1.msra.mxu0 %v275
    %504 = vmatprep.subr.mxu0 %v286
    %505 = vmatpush1.msra.mxu0 %v285
    %506 = vmatprep.subr.mxu0 %v296
    %507 = vmatpush1.msra.mxu0 %v295
    %508 = vmatprep.subr.mxu0 %v306
    %509 = vmatpush1.msra.mxu0 %v305
    %510 = vmatprep.subr.mxu0 %v316
    %511 = vmatpush1.msra.mxu0 %v315
    %512 = vmatprep.subr.mxu0 %v326
    %513 = vmatpush1.msra.mxu0 %v325
    %514 = vmatprep.subr.mxu0 %v336
    %515 = vmatpush1.msra.mxu0 %v335
    %516 = vmatprep.subr.mxu0 %v346
    %517 = vmatpush1.msra.mxu0 %v345
    %518 = vmatprep.subr.mxu0 %v356
    %519 = vmatpush1.msra.mxu0 %v355
    %520 = vmatprep.subr.mxu0 %v366
    %521 = vmatpush1.msra.mxu0 %v365
    %522 = vmatprep.subr.mxu0 %v376
    %523 = vmatpush1.msra.mxu0 %v375
    %524 = vmatprep.subr.mxu0 %v386
    %525 = vmatpush1.msra.mxu0 %v385
    %526 = vmatprep.subr.mxu0 %v396
    %527 = vmatpush1.msra.mxu0 %v395
    %528 = vmatprep.subr.mxu0 %v406
    %529 = vmatpush1.msra.mxu0 %v405
    %530 = vmatprep.subr.mxu0 %v416
    %531 = vmatpush1.msra.mxu0 %v415
    %532 = vmatprep.subr.mxu0 %v426
    %533 = vmatpush1.msra.mxu0 %v425
    %534 = vmatprep.subr.mxu0 %v454
    %535 = vmatpush1.msra.mxu0 %v451
    %536 = vmatprep.subr.mxu0 0.0
    %537 = vmatpush1.msra.mxu0 0.0
    %538 = vmatprep.subr.mxu0 0.0
    %539 = vmatpush1.msra.mxu0 0.0
    %540 = vmatprep.subr.mxu0 0.0
    %541 = vmatpush1.msra.mxu0 0.0
    %542 = vmatprep.subr.mxu0 0.0
    %543 = vmatpush1.msra.mxu0 0.0
    %544 = vmatprep.mubr.f32.mxu0 %v447
    %545 = vmatmul.mubr.f32.gmra.mrb[0].mxu0 %v161
    %v546 = vpop.f32.mrb[0].mxu0
    %v547 = vadd.f32 0.0, %v546
    %v548 = vpop.f32.mrb[0].mxu0
    %v549 = vadd.f32 0.0, %v548
    %550 = vdwg.mxu0
    %551 = vmatprep.subr.mxu0 %v168
    %552 = vmatpush1.msra.mxu0 %v167
    %553 = vmatprep.subr.mxu0 %v178
    %554 = vmatpush1.msra.mxu0 %v177
    %555 = vmatprep.subr.mxu0 %v188
    %556 = vmatpush1.msra.mxu0 %v187
    %557 = vmatprep.subr.mxu0 %v198
    %558 = vmatpush1.msra.mxu0 %v197
    %559 = vmatprep.subr.mxu0 %v208
    %560 = vmatpush1.msra.mxu0 %v207
    %561 = vmatprep.subr.mxu0 %v218
    %562 = vmatpush1.msra.mxu0 %v217
    %563 = vmatprep.subr.mxu0 %v228
    %564 = vmatpush1.msra.mxu0 %v227
    %565 = vmatprep.subr.mxu0 %v238
    %566 = vmatpush1.msra.mxu0 %v237
    %567 = vmatprep.subr.mxu0 %v248
    %568 = vmatpush1.msra.mxu0 %v247
    %569 = vmatprep.subr.mxu0 %v258
    %570 = vmatpush1.msra.mxu0 %v257
    %571 = vmatprep.subr.mxu0 %v268
    %572 = vmatpush1.msra.mxu0 %v267
    %573 = vmatprep.subr.mxu0 %v278
    %574 = vmatpush1.msra.mxu0 %v277
    %575 = vmatprep.subr.mxu0 %v288
    %576 = vmatpush1.msra.mxu0 %v287
    %577 = vmatprep.subr.mxu0 %v298
    %578 = vmatpush1.msra.mxu0 %v297
    %579 = vmatprep.subr.mxu0 %v308
    %580 = vmatpush1.msra.mxu0 %v307
    %581 = vmatprep.subr.mxu0 %v318
    %582 = vmatpush1.msra.mxu0 %v317
    %583 = vmatprep.subr.mxu0 %v328
    %584 = vmatpush1.msra.mxu0 %v327
    %585 = vmatprep.subr.mxu0 %v338
    %586 = vmatpush1.msra.mxu0 %v337
    %587 = vmatprep.subr.mxu0 %v348
    %588 = vmatpush1.msra.mxu0 %v347
    %589 = vmatprep.subr.mxu0 %v358
    %590 = vmatpush1.msra.mxu0 %v357
    %591 = vmatprep.subr.mxu0 %v368
    %592 = vmatpush1.msra.mxu0 %v367
    %593 = vmatprep.subr.mxu0 %v378
    %594 = vmatpush1.msra.mxu0 %v377
    %595 = vmatprep.subr.mxu0 %v388
    %596 = vmatpush1.msra.mxu0 %v387
    %597 = vmatprep.subr.mxu0 %v398
    %598 = vmatpush1.msra.mxu0 %v397
    %599 = vmatprep.subr.mxu0 %v408
    %600 = vmatpush1.msra.mxu0 %v407
    %601 = vmatprep.subr.mxu0 %v418
    %602 = vmatpush1.msra.mxu0 %v417
    %603 = vmatprep.subr.mxu0 %v428
    %604 = vmatpush1.msra.mxu0 %v427
    %605 = vmatprep.subr.mxu0 %v460
    %606 = vmatpush1.msra.mxu0 %v457
    %607 = vmatprep.subr.mxu0 0.0
    %608 = vmatpush1.msra.mxu0 0.0
    %609 = vmatprep.subr.mxu0 0.0
    %610 = vmatpush1.msra.mxu0 0.0
    %611 = vmatprep.subr.mxu0 0.0
    %612 = vmatpush1.msra.mxu0 0.0
    %613 = vmatprep.subr.mxu0 0.0
    %614 = vmatpush1.msra.mxu0 0.0
    %615 = vmatprep.mubr.f32.mxu0 %v447
    %616 = vmatmul.mubr.f32.gmra.mrb[0].mxu0 %v161
    %v617 = vpop.f32.mrb[0].mxu0
    %v618 = vadd.f32 0.0, %v617
    %v619 = vpop.f32.mrb[0].mxu0
    %v620 = vadd.f32 0.0, %v619
    %621 = vdwg.mxu0
    %622 = vmatprep.subr.mxu0 %v170
    %623 = vmatpush1.msra.mxu0 %v169
    %624 = vmatprep.subr.mxu0 %v180
    %625 = vmatpush1.msra.mxu0 %v179
    %626 = vmatprep.subr.mxu0 %v190
    %627 = vmatpush1.msra.mxu0 %v189
    %628 = vmatprep.subr.mxu0 %v200
    %629 = vmatpush1.msra.mxu0 %v199
    %630 = vmatprep.subr.mxu0 %v210
    %631 = vmatpush1.msra.mxu0 %v209
    %632 = vmatprep.subr.mxu0 %v220
    %633 = vmatpush1.msra.mxu0 %v219
    %634 = vmatprep.subr.mxu0 %v230
    %635 = vmatpush1.msra.mxu0 %v229
    %636 = vmatprep.subr.mxu0 %v240
    %637 = vmatpush1.msra.mxu0 %v239
    %638 = vmatprep.subr.mxu0 %v250
    %639 = vmatpush1.msra.mxu0 %v249
    %640 = vmatprep.subr.mxu0 %v260
    %641 = vmatpush1.msra.mxu0 %v259
    %642 = vmatprep.subr.mxu0 %v270
    %643 = vmatpush1.msra.mxu0 %v269
    %644 = vmatprep.subr.mxu0 %v280
    %645 = vmatpush1.msra.mxu0 %v279
    %646 = vmatprep.subr.mxu0 %v290
    %647 = vmatpush1.msra.mxu0 %v289
    %648 = vmatprep.subr.mxu0 %v300
    %649 = vmatpush1.msra.mxu0 %v299
    %650 = vmatprep.subr.mxu0 %v310
    %651 = vmatpush1.msra.mxu0 %v309
    %652 = vmatprep.subr.mxu0 %v320
    %653 = vmatpush1.msra.mxu0 %v319
    %654 = vmatprep.subr.mxu0 %v330
    %655 = vmatpush1.msra.mxu0 %v329
    %656 = vmatprep.subr.mxu0 %v340
    %657 = vmatpush1.msra.mxu0 %v339
    %658 = vmatprep.subr.mxu0 %v350
    %659 = vmatpush1.msra.mxu0 %v349
    %660 = vmatprep.subr.mxu0 %v360
    %661 = vmatpush1.msra.mxu0 %v359
    %662 = vmatprep.subr.mxu0 %v370
    %663 = vmatpush1.msra.mxu0 %v369
    %664 = vmatprep.subr.mxu0 %v380
    %665 = vmatpush1.msra.mxu0 %v379
    %666 = vmatprep.subr.mxu0 %v390
    %667 = vmatpush1.msra.mxu0 %v389
    %668 = vmatprep.subr.mxu0 %v400
    %669 = vmatpush1.msra.mxu0 %v399
    %670 = vmatprep.subr.mxu0 %v410
    %671 = vmatpush1.msra.mxu0 %v409
    %672 = vmatprep.subr.mxu0 %v420
    %673 = vmatpush1.msra.mxu0 %v419
    %674 = vmatprep.subr.mxu0 %v430
    %675 = vmatpush1.msra.mxu0 %v429
    %676 = vmatprep.subr.mxu0 %v466
    %677 = vmatpush1.msra.mxu0 %v463
    %678 = vmatprep.subr.mxu0 0.0
    %679 = vmatpush1.msra.mxu0 0.0
    %680 = vmatprep.subr.mxu0 0.0
    %681 = vmatpush1.msra.mxu0 0.0
    %682 = vmatprep.subr.mxu0 0.0
    %683 = vmatpush1.msra.mxu0 0.0
    %684 = vmatprep.subr.mxu0 0.0
    %685 = vmatpush1.msra.mxu0 0.0
    %686 = vmatprep.mubr.f32.mxu0 %v447
    %687 = vmatmul.mubr.f32.gmra.mrb[0].mxu0 %v161
    %v688 = vpop.f32.mrb[0].mxu0
    %v689 = vadd.f32 0.0, %v688
    %v690 = vpop.f32.mrb[0].mxu0
    %v691 = vadd.f32 0.0, %v690
    %692 = vdwg.mxu0
    %693 = vmatprep.subr.mxu0 %v172
    %694 = vmatpush1.msra.mxu0 %v171
    %695 = vmatprep.subr.mxu0 %v182
    %696 = vmatpush1.msra.mxu0 %v181
    %697 = vmatprep.subr.mxu0 %v192
    %698 = vmatpush1.msra.mxu0 %v191
    %699 = vmatprep.subr.mxu0 %v202
    %700 = vmatpush1.msra.mxu0 %v201
    %701 = vmatprep.subr.mxu0 %v212
    %702 = vmatpush1.msra.mxu0 %v211
    %703 = vmatprep.subr.mxu0 %v222
    %704 = vmatpush1.msra.mxu0 %v221
    %705 = vmatprep.subr.mxu0 %v232
    %706 = vmatpush1.msra.mxu0 %v231
    %707 = vmatprep.subr.mxu0 %v242
    %708 = vmatpush1.msra.mxu0 %v241
    %709 = vmatprep.subr.mxu0 %v252
    %710 = vmatpush1.msra.mxu0 %v251
    %711 = vmatprep.subr.mxu0 %v262
    %712 = vmatpush1.msra.mxu0 %v261
    %713 = vmatprep.subr.mxu0 %v272
    %714 = vmatpush1.msra.mxu0 %v271
    %715 = vmatprep.subr.mxu0 %v282
    %716 = vmatpush1.msra.mxu0 %v281
    %717 = vmatprep.subr.mxu0 %v292
    %718 = vmatpush1.msra.mxu0 %v291
    %719 = vmatprep.subr.mxu0 %v302
    %720 = vmatpush1.msra.mxu0 %v301
    %721 = vmatprep.subr.mxu0 %v312
    %722 = vmatpush1.msra.mxu0 %v311
    %723 = vmatprep.subr.mxu0 %v322
    %724 = vmatpush1.msra.mxu0 %v321
    %725 = vmatprep.subr.mxu0 %v332
    %726 = vmatpush1.msra.mxu0 %v331
    %727 = vmatprep.subr.mxu0 %v342
    %728 = vmatpush1.msra.mxu0 %v341
    %729 = vmatprep.subr.mxu0 %v352
    %730 = vmatpush1.msra.mxu0 %v351
    %731 = vmatprep.subr.mxu0 %v362
    %732 = vmatpush1.msra.mxu0 %v361
    %733 = vmatprep.subr.mxu0 %v372
    %734 = vmatpush1.msra.mxu0 %v371
    %735 = vmatprep.subr.mxu0 %v382
    %736 = vmatpush1.msra.mxu0 %v381
    %737 = vmatprep.subr.mxu0 %v392
    %738 = vmatpush1.msra.mxu0 %v391
    %739 = vmatprep.subr.mxu0 %v402
    %740 = vmatpush1.msra.mxu0 %v401
    %741 = vmatprep.subr.mxu0 %v412
    %742 = vmatpush1.msra.mxu0 %v411
    %743 = vmatprep.subr.mxu0 %v422
    %744 = vmatpush1.msra.mxu0 %v421
    %745 = vmatprep.subr.mxu0 %v432
    %746 = vmatpush1.msra.mxu0 %v431
    %747 = vmatprep.subr.mxu0 %v472
    %748 = vmatpush1.msra.mxu0 %v469
    %749 = vmatprep.subr.mxu0 0.0
    %750 = vmatpush1.msra.mxu0 0.0
    %751 = vmatprep.subr.mxu0 0.0
    %752 = vmatpush1.msra.mxu0 0.0
    %753 = vmatprep.subr.mxu0 0.0
    %754 = vmatpush1.msra.mxu0 0.0
    %755 = vmatprep.subr.mxu0 0.0
    %756 = vmatpush1.msra.mxu0 0.0
    %757 = vmatprep.mubr.f32.mxu0 %v447
    %758 = vmatmul.mubr.f32.gmra.mrb[0].mxu0 %v161
    %v759 = vpop.f32.mrb[0].mxu0
    %v760 = vadd.f32 0.0, %v759
    %v761 = vpop.f32.mrb[0].mxu0
    %v762 = vadd.f32 0.0, %v761
    %763 = vdwg.mxu0
    %764 = vmatprep.subr.mxu0 %v174
    %765 = vmatpush1.msra.mxu0 %v173
    %766 = vmatprep.subr.mxu0 %v184
    %767 = vmatpush1.msra.mxu0 %v183
    %768 = vmatprep.subr.mxu0 %v194
    %769 = vmatpush1.msra.mxu0 %v193
    %770 = vmatprep.subr.mxu0 %v204
    %771 = vmatpush1.msra.mxu0 %v203
    %772 = vmatprep.subr.mxu0 %v214
    %773 = vmatpush1.msra.mxu0 %v213
    %774 = vmatprep.subr.mxu0 %v224
    %775 = vmatpush1.msra.mxu0 %v223
    %776 = vmatprep.subr.mxu0 %v234
    %777 = vmatpush1.msra.mxu0 %v233
    %778 = vmatprep.subr.mxu0 %v244
    %779 = vmatpush1.msra.mxu0 %v243
    %780 = vmatprep.subr.mxu0 %v254
    %781 = vmatpush1.msra.mxu0 %v253
    %782 = vmatprep.subr.mxu0 %v264
    %783 = vmatpush1.msra.mxu0 %v263
    %784 = vmatprep.subr.mxu0 %v274
    %785 = vmatpush1.msra.mxu0 %v273
    %786 = vmatprep.subr.mxu0 %v284
    %787 = vmatpush1.msra.mxu0 %v283
    %788 = vmatprep.subr.mxu0 %v294
    %789 = vmatpush1.msra.mxu0 %v293
    %790 = vmatprep.subr.mxu0 %v304
    %791 = vmatpush1.msra.mxu0 %v303
    %792 = vmatprep.subr.mxu0 %v314
    %793 = vmatpush1.msra.mxu0 %v313
    %794 = vmatprep.subr.mxu0 %v324
    %795 = vmatpush1.msra.mxu0 %v323
    %796 = vmatprep.subr.mxu0 %v334
    %797 = vmatpush1.msra.mxu0 %v333
    %798 = vmatprep.subr.mxu0 %v344
    %799 = vmatpush1.msra.mxu0 %v343
    %800 = vmatprep.subr.mxu0 %v354
    %801 = vmatpush1.msra.mxu0 %v353
    %802 = vmatprep.subr.mxu0 %v364
    %803 = vmatpush1.msra.mxu0 %v363
    %804 = vmatprep.subr.mxu0 %v374
    %805 = vmatpush1.msra.mxu0 %v373
    %806 = vmatprep.subr.mxu0 %v384
    %807 = vmatpush1.msra.mxu0 %v383
    %808 = vmatprep.subr.mxu0 %v394
    %809 = vmatpush1.msra.mxu0 %v393
    %810 = vmatprep.subr.mxu0 %v404
    %811 = vmatpush1.msra.mxu0 %v403
    %812 = vmatprep.subr.mxu0 %v414
    %813 = vmatpush1.msra.mxu0 %v413
    %814 = vmatprep.subr.mxu0 %v424
    %815 = vmatpush1.msra.mxu0 %v423
    %816 = vmatprep.subr.mxu0 %v434
    %817 = vmatpush1.msra.mxu0 %v433
    %818 = vmatprep.subr.mxu0 %v478
    %819 = vmatpush1.msra.mxu0 %v475
    %820 = vmatprep.subr.mxu0 0.0
    %821 = vmatpush1.msra.mxu0 0.0
    %822 = vmatprep.subr.mxu0 0.0
    %823 = vmatpush1.msra.mxu0 0.0
    %824 = vmatprep.subr.mxu0 0.0
    %825 = vmatpush1.msra.mxu0 0.0
    %826 = vmatprep.subr.mxu0 0.0
    %827 = vmatpush1.msra.mxu0 0.0
    %828 = vmatprep.mubr.f32.mxu0 %v447
    %829 = vmatmul.mubr.f32.gmra.mrb[0].mxu0 %v161
    %v830 = vpop.f32.mrb[0].mxu0
    %v831 = vadd.f32 0.0, %v830
    %v832 = vpop.f32.mrb[0].mxu0
    %v833 = vadd.f32 0.0, %v832
    %834 = vdwg.mxu0
    %v840 = vrot.slane %v691, 2
    %v841 = vrot.slane %v760, 2
    %v842 = vrot.slane %v762, 2
    %v843 = vrot.slane %v831, 2
    %v844 = vrot.slane %v833, 2
    %v850 = vadd.f32 %v547, %v840
    %v851 = vadd.f32 %v549, %v841
    %v852 = vadd.f32 %v618, %v842
    %v853 = vadd.f32 %v620, %v843
    %v854 = vadd.f32 %v689, %v844
    %v855 = vmax.f32 %v850, %v851
    %v856 = vmax.f32 %v855, %v852
    %v857 = vmax.f32 %v856, %v853
    %v858 = vmax.f32 %v857, %v854
    %v859 = vld [vmem:[#allocation9] sm:$0x1]
    %v860 = vlaneseq
    %v861 = vshrl.u32 %v860, 7
    %v862 = vsub.s32 0, %v861
    %v863 = vrot.slane %v859, %v862
    %v864 = vadd.f32 %v858, %v863
    %v865 = vmax.f32 %v864, 0.0
    %v866 = vld [vmem:[#allocation7] sm:$0xff]
    %v867 = vld [vmem:[#allocation7 + $0x8] sm:$0xff]
    %v868 = vld [vmem:[#allocation7 + $0x10] sm:$0xff]
    %v869 = vld [vmem:[#allocation7 + $0x18] sm:$0xff]
    %v870 = vld [vmem:[#allocation7 + $0x20] sm:$0xff]
    %v871 = vld [vmem:[#allocation7 + $0x28] sm:$0xff]
    %v872 = vld [vmem:[#allocation7 + $0x30] sm:$0xff]
    %v873 = vld [vmem:[#allocation7 + $0x38] sm:$0xff]
    %v874 = vld [vmem:[#allocation7 + $0x40] sm:$0xff]
    %v875 = vld [vmem:[#allocation7 + $0x48] sm:$0xff]
    %v876 = vld [vmem:[#allocation7 + $0x50] sm:$0xff]
    %v877 = vld [vmem:[#allocation7 + $0x58] sm:$0xff]
    %v878 = vld [vmem:[#allocation7 + $0x60] sm:$0xff]
    %v879 = vld [vmem:[#allocation7 + $0x68] sm:$0xff]
    %v880 = vld [vmem:[#allocation7 + $0x70] sm:$0xff]
    %v881 = vld [vmem:[#allocation7 + $0x78] sm:$0xff]
    %882 = vmatprep.subr.mxu0 0.0
    %883 = vmatpush1.msra.mxu0 %v866
    %884 = vmatprep.subr.mxu0 0.0
    %885 = vmatpush1.msra.mxu0 %v867
    %886 = vmatprep.subr.mxu0 0.0
    %887 = vmatpush1.msra.mxu0 %v868
    %888 = vmatprep.subr.mxu0 0.0
    %889 = vmatpush1.msra.mxu0 %v869
    %890 = vmatprep.subr.mxu0 0.0
    %891 = vmatpush1.msra.mxu0 %v870
    %892 = vmatprep.subr.mxu0 0.0
    %893 = vmatpush1.msra.mxu0 %v871
    %894 = vmatprep.subr.mxu0 0.0
    %895 = vmatpush1.msra.mxu0 %v872
    %896 = vmatprep.subr.mxu0 0.0
    %897 = vmatpush1.msra.mxu0 %v873
    %898 = vmatprep.subr.mxu0 0.0
    %899 = vmatpush1.msra.mxu0 %v874
    %900 = vmatprep.subr.mxu0 0.0
    %901 = vmatpush1.msra.mxu0 %v875
    %902 = vmatprep.subr.mxu0 0.0
    %903 = vmatpush1.msra.mxu0 %v876
    %904 = vmatprep.subr.mxu0 0.0
    %905 = vmatpush1.msra.mxu0 %v877
    %906 = vmatprep.subr.mxu0 0.0
    %907 = vmatpush1.msra.mxu0 %v878
    %908 = vmatprep.subr.mxu0 0.0
    %909 = vmatpush1.msra.mxu0 %v879
    %910 = vmatprep.subr.mxu0 0.0
    %911 = vmatpush1.msra.mxu0 %v880
    %912 = vmatprep.subr.mxu0 0.0
    %913 = vmatpush1.msra.mxu0 %v881
    %914 = vmatprep.subr.mxu0 0.0
    %915 = vmatpush1.msra.mxu0 0.0
    %916 = vmatprep.subr.mxu0 0.0
    %917 = vmatpush1.msra.mxu0 0.0
    %918 = vmatprep.subr.mxu0 0.0
    %919 = vmatpush1.msra.mxu0 0.0
    %920 = vmatprep.subr.mxu0 0.0
    %921 = vmatpush1.msra.mxu0 0.0
    %922 = vmatprep.subr.mxu0 0.0
    %923 = vmatpush1.msra.mxu0 0.0
    %924 = vmatprep.subr.mxu0 0.0
    %925 = vmatpush1.msra.mxu0 0.0
    %926 = vmatprep.subr.mxu0 0.0
    %927 = vmatpush1.msra.mxu0 0.0
    %928 = vmatprep.subr.mxu0 0.0
    %929 = vmatpush1.msra.mxu0 0.0
    %930 = vmatprep.subr.mxu0 0.0
    %931 = vmatpush1.msra.mxu0 0.0
    %932 = vmatprep.subr.mxu0 0.0
    %933 = vmatpush1.msra.mxu0 0.0
    %934 = vmatprep.subr.mxu0 0.0
    %935 = vmatpush1.msra.mxu0 0.0
    %936 = vmatprep.subr.mxu0 0.0
    %937 = vmatpush1.msra.mxu0 0.0
    %938 = vmatprep.subr.mxu0 0.0
    %939 = vmatpush1.msra.mxu0 0.0
    %940 = vmatprep.subr.mxu0 0.0
    %941 = vmatpush1.msra.mxu0 0.0
    %942 = vmatprep.subr.mxu0 0.0
    %943 = vmatpush1.msra.mxu0 0.0
    %944 = vmatprep.subr.mxu0 0.0
    %945 = vmatpush1.msra.mxu0 0.0
    %946 = vmatprep.mubr.f32.mxu0 0.0
    %947 = vmatmul.mubr.f32.gmra.mrb[0].mxu0 %v865
    %v948 = vpop.f32.mrb[0].mxu0
    %v949 = vadd.f32 0.0, %v948
    %v950 = vpop.f32.mrb[0].mxu0
    %951 = vdwg.mxu0
    %v953 = vrot.slane %v949, 2
    %954 = vrot.lane.b32.xlu0 %v953, 64
    %v955 = vpop.permute.xlu0 %954
    %v957 = vadd.f32 %v949, %v955
    %959 = vrot.lane.b32.xlu0 %v957, 96
    %v960 = vpop.permute.xlu0 %959
    %v962 = vmax.f32 %v957, %v960
    %v963 = vld [vmem:[#allocation9 + $0x1] sm:$0x1]
    %v964 = vlaneseq
    %v965 = vshrl.u32 %v964, 7
    %v966 = vsub.s32 0, %v965
    %v967 = vrot.slane %v963, %v966
    %v968 = vadd.f32 %v962, %v967
    %v969 = vmax.f32 %v968, 0.0
    %v970 = vld [vmem:[#allocation7 + $0x80] sm:$0xff]
    %v971 = vld [vmem:[#allocation7 + $0x88] sm:$0xff]
    %v972 = vld [vmem:[#allocation7 + $0x90] sm:$0xff]
    %v973 = vld [vmem:[#allocation7 + $0x98] sm:$0xff]
    %v974 = vld [vmem:[#allocation7 + $0xa0] sm:$0xff]
    %v975 = vld [vmem:[#allocation7 + $0xa8] sm:$0xff]
    %v976 = vld [vmem:[#allocation7 + $0xb0] sm:$0xff]
    %v977 = vld [vmem:[#allocation7 + $0xb8] sm:$0xff]
    %v979 = vrot.slane %v969, 2
    %vm980 = vcmask 261120
    %v981 = vsel %vm980, %v979, 0
    %983 = vmatprep.subr.mxu0 0.0
    %984 = vmatpush1.msra.mxu0 %v974
    %985 = vmatprep.subr.mxu0 0.0
    %986 = vmatpush1.msra.mxu0 %v975
    %987 = vmatprep.subr.mxu0 0.0
    %988 = vmatpush1.msra.mxu0 %v976
    %989 = vmatprep.subr.mxu0 0.0
    %990 = vmatpush1.msra.mxu0 %v977
    %991 = vmatprep.subr.mxu0 0.0
    %992 = vmatpush1.msra.mxu0 0.0
    %993 = vmatprep.subr.mxu0 0.0
    %994 = vmatpush1.msra.mxu0 0.0
    %995 = vmatprep.subr.mxu0 0.0
    %996 = vmatpush1.msra.mxu0 0.0
    %997 = vmatprep.subr.mxu0 0.0
    %998 = vmatpush1.msra.mxu0 0.0
    %999 = vmatprep.subr.mxu0 0.0
    %1000 = vmatpush1.msra.mxu0 0.0
    %1001 = vmatprep.subr.mxu0 0.0
    %1002 = vmatpush1.msra.mxu0 0.0
    %1003 = vmatprep.subr.mxu0 0.0
    %1004 = vmatpush1.msra.mxu0 0.0
    %1005 = vmatprep.subr.mxu0 0.0
    %1006 = vmatpush1.msra.mxu0 0.0
    %1007 = vmatprep.subr.mxu0 0.0
    %1008 = vmatpush1.msra.mxu0 0.0
    %1009 = vmatprep.subr.mxu0 0.0
    %1010 = vmatpush1.msra.mxu0 0.0
    %1011 = vmatprep.subr.mxu0 0.0
    %1012 = vmatpush1.msra.mxu0 0.0
    %1013 = vmatprep.subr.mxu0 0.0
    %1014 = vmatpush1.msra.mxu0 0.0
    %1015 = vmatprep.subr.mxu0 0.0
    %1016 = vmatpush1.msra.mxu0 0.0
    %1017 = vmatprep.subr.mxu0 0.0
    %1018 = vmatpush1.msra.mxu0 0.0
    %1019 = vmatprep.subr.mxu0 0.0
    %1020 = vmatpush1.msra.mxu0 0.0
    %1021 = vmatprep.subr.mxu0 0.0
    %1022 = vmatpush1.msra.mxu0 0.0
    %1023 = vmatprep.subr.mxu0 0.0
    %1024 = vmatpush1.msra.mxu0 0.0
    %1025 = vmatprep.subr.mxu0 0.0
    %1026 = vmatpush1.msra.mxu0 0.0
    %1027 = vmatprep.subr.mxu0 0.0
    %1028 = vmatpush1.msra.mxu0 0.0
    %1029 = vmatprep.subr.mxu0 0.0
    %1030 = vmatpush1.msra.mxu0 0.0
    %1031 = vmatprep.subr.mxu0 0.0
    %1032 = vmatpush1.msra.mxu0 0.0
    %1033 = vmatprep.subr.mxu0 0.0
    %1034 = vmatpush1.msra.mxu0 0.0
    %1035 = vmatprep.subr.mxu0 0.0
    %1036 = vmatpush1.msra.mxu0 0.0
    %1037 = vmatprep.subr.mxu0 0.0
    %1038 = vmatpush1.msra.mxu0 0.0
    %1039 = vmatprep.subr.mxu0 0.0
    %1040 = vmatpush1.msra.mxu0 0.0
    %1041 = vmatprep.subr.mxu0 0.0
    %1042 = vmatpush1.msra.mxu0 0.0
    %1043 = vmatprep.subr.mxu0 0.0
    %1044 = vmatpush1.msra.mxu0 0.0
    %1045 = vmatprep.subr.mxu0 0.0
    %1046 = vmatpush1.msra.mxu0 0.0
    %1047 = vmatprep.mubr.f32.mxu0 0.0
    %1048 = vmatmul.mubr.f32.gmra.mrb[0].mxu0 %v981
    %v1049 = vpop.f32.mrb[0].mxu0
    %v1050 = vadd.f32 0.0, %v1049
    %v1051 = vpop.f32.mrb[0].mxu0
    %1052 = vdwg.mxu0
    %v1053 = vsel %vm980, %v969, 0
    %1055 = vmatprep.subr.mxu0 0.0
    %1056 = vmatpush1.msra.mxu0 %v970
    %1057 = vmatprep.subr.mxu0 0.0
    %1058 = vmatpush1.msra.mxu0 %v971
    %1059 = vmatprep.subr.mxu0 0.0
    %1060 = vmatpush1.msra.mxu0 %v972
    %1061 = vmatprep.subr.mxu0 0.0
    %1062 = vmatpush1.msra.mxu0 %v973
    %1063 = vmatprep.subr.mxu0 0.0
    %1064 = vmatpush1.msra.mxu0 0.0
    %1065 = vmatprep.subr.mxu0 0.0
    %1066 = vmatpush1.msra.mxu0 0.0
    %1067 = vmatprep.subr.mxu0 0.0
    %1068 = vmatpush1.msra.mxu0 0.0
    %1069 = vmatprep.subr.mxu0 0.0
    %1070 = vmatpush1.msra.mxu0 0.0
    %1071 = vmatprep.subr.mxu0 0.0
    %1072 = vmatpush1.msra.mxu0 0.0
    %1073 = vmatprep.subr.mxu0 0.0
    %1074 = vmatpush1.msra.mxu0 0.0
    %1075 = vmatprep.subr.mxu0 0.0
    %1076 = vmatpush1.msra.mxu0 0.0
    %1077 = vmatprep.subr.mxu0 0.0
    %1078 = vmatpush1.msra.mxu0 0.0
    %1079 = vmatprep.subr.mxu0 0.0
    %1080 = vmatpush1.msra.mxu0 0.0
    %1081 = vmatprep.subr.mxu0 0.0
    %1082 = vmatpush1.msra.mxu0 0.0
    %1083 = vmatprep.subr.mxu0 0.0
    %1084 = vmatpush1.msra.mxu0 0.0
    %1085 = vmatprep.subr.mxu0 0.0
    %1086 = vmatpush1.msra.mxu0 0.0
    %1087 = vmatprep.subr.mxu0 0.0
    %1088 = vmatpush1.msra.mxu0 0.0
    %1089 = vmatprep.subr.mxu0 0.0
    %1090 = vmatpush1.msra.mxu0 0.0
    %1091 = vmatprep.subr.mxu0 0.0
    %1092 = vmatpush1.msra.mxu0 0.0
    %1093 = vmatprep.subr.mxu0 0.0
    %1094 = vmatpush1.msra.mxu0 0.0
    %1095 = vmatprep.subr.mxu0 0.0
    %1096 = vmatpush1.msra.mxu0 0.0
    %1097 = vmatprep.subr.mxu0 0.0
    %1098 = vmatpush1.msra.mxu0 0.0
    %1099 = vmatprep.subr.mxu0 0.0
    %1100 = vmatpush1.msra.mxu0 0.0
    %1101 = vmatprep.subr.mxu0 0.0
    %1102 = vmatpush1.msra.mxu0 0.0
    %1103 = vmatprep.subr.mxu0 0.0
    %1104 = vmatpush1.msra.mxu0 0.0
    %1105 = vmatprep.subr.mxu0 0.0
    %1106 = vmatpush1.msra.mxu0 0.0
    %1107 = vmatprep.subr.mxu0 0.0
    %1108 = vmatpush1.msra.mxu0 0.0
    %1109 = vmatprep.subr.mxu0 0.0
    %1110 = vmatpush1.msra.mxu0 0.0
    %1111 = vmatprep.subr.mxu0 0.0
    %1112 = vmatpush1.msra.mxu0 0.0
    %1113 = vmatprep.subr.mxu0 0.0
    %1114 = vmatpush1.msra.mxu0 0.0
    %1115 = vmatprep.subr.mxu0 0.0
    %1116 = vmatpush1.msra.mxu0 0.0
    %1117 = vmatprep.subr.mxu0 0.0
    %1118 = vmatpush1.msra.mxu0 0.0
    %1119 = vmatprep.mubr.f32.mxu0 0.0
    %1120 = vmatmul.mubr.f32.gmra.mrb[0].mxu0 %v1053
    %v1121 = vpop.f32.mrb[0].mxu0
    %v1122 = vadd.f32 %v1050, %v1121
    %v1123 = vpop.f32.mrb[0].mxu0
    %1124 = vdwg.mxu0
    %v1125 = vld [vmem:[#allocation9 + $0x2] sm:$0x1]
    %v1126 = vlaneseq
    %v1127 = vshrl.u32 %v1126, 7
    %v1128 = vsub.s32 0, %v1127
    %v1129 = vrot.slane %v1125, %v1128
    %v1130 = vadd.f32 %v1122, %v1129
    %v1131 = vmax.f32 %v1130, 0.0
    %v1132 = vld [vmem:[#allocation7 + $0xc0] sm:$0xff]
    %v1133 = vld [vmem:[#allocation7 + $0xc8] sm:$0xff]
    %v1134 = vld [vmem:[#allocation7 + $0xd0] sm:$0xff]
    %v1135 = vld [vmem:[#allocation7 + $0xd8] sm:$0xff]
    %v1136 = vld [vmem:[#allocation2] sm:$0x3]
    %v1137 = vld [vmem:[#allocation7 + $0xe0] sm:$0xff]
    %v1139 = vsel %vm90, %v1136, 0
    %1141 = vmatprep.subr.mxu0 0.0
    %1142 = vmatpush1.msra.mxu0 %v1137
    %1143 = vmatprep.subr.mxu0 0.0
    %1144 = vmatpush1.msra.mxu0 0.0
    %1145 = vmatprep.subr.mxu0 0.0
    %1146 = vmatpush1.msra.mxu0 0.0
    %1147 = vmatprep.subr.mxu0 0.0
    %1148 = vmatpush1.msra.mxu0 0.0
    %1149 = vmatprep.subr.mxu0 0.0
    %1150 = vmatpush1.msra.mxu0 0.0
    %1151 = vmatprep.subr.mxu0 0.0
    %1152 = vmatpush1.msra.mxu0 0.0
    %1153 = vmatprep.subr.mxu0 0.0
    %1154 = vmatpush1.msra.mxu0 0.0
    %1155 = vmatprep.subr.mxu0 0.0
    %1156 = vmatpush1.msra.mxu0 0.0
    %1157 = vmatprep.subr.mxu0 0.0
    %1158 = vmatpush1.msra.mxu0 0.0
    %1159 = vmatprep.subr.mxu0 0.0
    %1160 = vmatpush1.msra.mxu0 0.0
    %1161 = vmatprep.subr.mxu0 0.0
    %1162 = vmatpush1.msra.mxu0 0.0
    %1163 = vmatprep.subr.mxu0 0.0
    %1164 = vmatpush1.msra.mxu0 0.0
    %1165 = vmatprep.subr.mxu0 0.0
    %1166 = vmatpush1.msra.mxu0 0.0
    %1167 = vmatprep.subr.mxu0 0.0
    %1168 = vmatpush1.msra.mxu0 0.0
    %1169 = vmatprep.subr.mxu0 0.0
    %1170 = vmatpush1.msra.mxu0 0.0
    %1171 = vmatprep.subr.mxu0 0.0
    %1172 = vmatpush1.msra.mxu0 0.0
    %1173 = vmatprep.subr.mxu0 0.0
    %1174 = vmatpush1.msra.mxu0 0.0
    %1175 = vmatprep.subr.mxu0 0.0
    %1176 = vmatpush1.msra.mxu0 0.0
    %1177 = vmatprep.subr.mxu0 0.0
    %1178 = vmatpush1.msra.mxu0 0.0
    %1179 = vmatprep.subr.mxu0 0.0
    %1180 = vmatpush1.msra.mxu0 0.0
    %1181 = vmatprep.subr.mxu0 0.0
    %1182 = vmatpush1.msra.mxu0 0.0
    %1183 = vmatprep.subr.mxu0 0.0
    %1184 = vmatpush1.msra.mxu0 0.0
    %1185 = vmatprep.subr.mxu0 0.0
    %1186 = vmatpush1.msra.mxu0 0.0
    %1187 = vmatprep.subr.mxu0 0.0
    %1188 = vmatpush1.msra.mxu0 0.0
    %1189 = vmatprep.subr.mxu0 0.0
    %1190 = vmatpush1.msra.mxu0 0.0
    %1191 = vmatprep.subr.mxu0 0.0
    %1192 = vmatpush1.msra.mxu0 0.0
    %1193 = vmatprep.subr.mxu0 0.0
    %1194 = vmatpush1.msra.mxu0 0.0
    %1195 = vmatprep.subr.mxu0 0.0
    %1196 = vmatpush1.msra.mxu0 0.0
    %1197 = vmatprep.subr.mxu0 0.0
    %1198 = vmatpush1.msra.mxu0 0.0
    %1199 = vmatprep.subr.mxu0 0.0
    %1200 = vmatpush1.msra.mxu0 0.0
    %1201 = vmatprep.subr.mxu0 0.0
    %1202 = vmatpush1.msra.mxu0 0.0
    %1203 = vmatprep.subr.mxu0 0.0
    %1204 = vmatpush1.msra.mxu0 0.0
    %1205 = vmatprep.mubr.f32.mxu0 0.0
    %1206 = vmatmul.mubr.f32.gmra.mrb[0].mxu0 %v1139
    %v1207 = vpop.f32.mrb[0].mxu0
    %v1208 = vadd.f32 0.0, %v1207
    %v1209 = vpop.f32.mrb[0].mxu0
    %1210 = vdwg.mxu0
    %v1212 = vsel %vm980, %v1131, 0
    %1214 = vmatprep.subr.mxu0 0.0
    %1215 = vmatpush1.msra.mxu0 %v1132
    %1216 = vmatprep.subr.mxu0 0.0
    %1217 = vmatpush1.msra.mxu0 %v1133
    %1218 = vmatprep.subr.mxu0 0.0
    %1219 = vmatpush1.msra.mxu0 %v1134
    %1220 = vmatprep.subr.mxu0 0.0
    %1221 = vmatpush1.msra.mxu0 %v1135
    %1222 = vmatprep.subr.mxu0 0.0
    %1223 = vmatpush1.msra.mxu0 0.0
    %1224 = vmatprep.subr.mxu0 0.0
    %1225 = vmatpush1.msra.mxu0 0.0
    %1226 = vmatprep.subr.mxu0 0.0
    %1227 = vmatpush1.msra.mxu0 0.0
    %1228 = vmatprep.subr.mxu0 0.0
    %1229 = vmatpush1.msra.mxu0 0.0
    %1230 = vmatprep.subr.mxu0 0.0
    %1231 = vmatpush1.msra.mxu0 0.0
    %1232 = vmatprep.subr.mxu0 0.0
    %1233 = vmatpush1.msra.mxu0 0.0
    %1234 = vmatprep.subr.mxu0 0.0
    %1235 = vmatpush1.msra.mxu0 0.0
    %1236 = vmatprep.subr.mxu0 0.0
    %1237 = vmatpush1.msra.mxu0 0.0
    %1238 = vmatprep.subr.mxu0 0.0
    %1239 = vmatpush1.msra.mxu0 0.0
    %1240 = vmatprep.subr.mxu0 0.0
    %1241 = vmatpush1.msra.mxu0 0.0
    %1242 = vmatprep.subr.mxu0 0.0
    %1243 = vmatpush1.msra.mxu0 0.0
    %1244 = vmatprep.subr.mxu0 0.0
    %1245 = vmatpush1.msra.mxu0 0.0
    %1246 = vmatprep.subr.mxu0 0.0
    %1247 = vmatpush1.msra.mxu0 0.0
    %1248 = vmatprep.subr.mxu0 0.0
    %1249 = vmatpush1.msra.mxu0 0.0
    %1250 = vmatprep.subr.mxu0 0.0
    %1251 = vmatpush1.msra.mxu0 0.0
    %1252 = vmatprep.subr.mxu0 0.0
    %1253 = vmatpush1.msra.mxu0 0.0
    %1254 = vmatprep.subr.mxu0 0.0
    %1255 = vmatpush1.msra.mxu0 0.0
    %1256 = vmatprep.subr.mxu0 0.0
    %1257 = vmatpush1.msra.mxu0 0.0
    %1258 = vmatprep.subr.mxu0 0.0
    %1259 = vmatpush1.msra.mxu0 0.0
    %1260 = vmatprep.subr.mxu0 0.0
    %1261 = vmatpush1.msra.mxu0 0.0
    %1262 = vmatprep.subr.mxu0 0.0
    %1263 = vmatpush1.msra.mxu0 0.0
    %1264 = vmatprep.subr.mxu0 0.0
    %1265 = vmatpush1.msra.mxu0 0.0
    %1266 = vmatprep.subr.mxu0 0.0
    %1267 = vmatpush1.msra.mxu0 0.0
    %1268 = vmatprep.subr.mxu0 0.0
    %1269 = vmatpush1.msra.mxu0 0.0
    %1270 = vmatprep.subr.mxu0 0.0
    %1271 = vmatpush1.msra.mxu0 0.0
    %1272 = vmatprep.subr.mxu0 0.0
    %1273 = vmatpush1.msra.mxu0 0.0
    %1274 = vmatprep.subr.mxu0 0.0
    %1275 = vmatpush1.msra.mxu0 0.0
    %1276 = vmatprep.subr.mxu0 0.0
    %1277 = vmatpush1.msra.mxu0 0.0
    %1278 = vmatprep.mubr.f32.mxu0 0.0
    %1279 = vmatmul.mubr.f32.gmra.mrb[0].mxu0 %v1212
    %v1280 = vpop.f32.mrb[0].mxu0
    %v1281 = vadd.f32 %v1208, %v1280
    %v1282 = vpop.f32.mrb[0].mxu0
    %1283 = vdwg.mxu0
    %v1284 = vld [vmem:[#allocation4] sm:$0x3]
    %v1285 = vld [vmem:[#allocation7 + $0xe8] sm:$0x3]
    %vm1286 = vcmask 15360
    %v1288 = vsel %vm1286, %v1284, 0
    %vm1290 = vcmask 1041408
    %v1292 = vsel %vm1290, %v1285, 0
    %1294 = vmatprep.subr.mxu0 0.0
    %1295 = vmatpush1.msra.mxu0 %v1292
    %1296 = vmatprep.subr.mxu0 0.0
    %1297 = vmatpush1.msra.mxu0 0.0
    %1298 = vmatprep.subr.mxu0 0.0
    %1299 = vmatpush1.msra.mxu0 0.0
    %1300 = vmatprep.subr.mxu0 0.0
    %1301 = vmatpush1.msra.mxu0 0.0
    %1302 = vmatprep.subr.mxu0 0.0
    %1303 = vmatpush1.msra.mxu0 0.0
    %1304 = vmatprep.subr.mxu0 0.0
    %1305 = vmatpush1.msra.mxu0 0.0
    %1306 = vmatprep.subr.mxu0 0.0
    %1307 = vmatpush1.msra.mxu0 0.0
    %1308 = vmatprep.subr.mxu0 0.0
    %1309 = vmatpush1.msra.mxu0 0.0
    %1310 = vmatprep.subr.mxu0 0.0
    %1311 = vmatpush1.msra.mxu0 0.0
    %1312 = vmatprep.subr.mxu0 0.0
    %1313 = vmatpush1.msra.mxu0 0.0
    %1314 = vmatprep.subr.mxu0 0.0
    %1315 = vmatpush1.msra.mxu0 0.0
    %1316 = vmatprep.subr.mxu0 0.0
    %1317 = vmatpush1.msra.mxu0 0.0
    %1318 = vmatprep.subr.mxu0 0.0
    %1319 = vmatpush1.msra.mxu0 0.0
    %1320 = vmatprep.subr.mxu0 0.0
    %1321 = vmatpush1.msra.mxu0 0.0
    %1322 = vmatprep.subr.mxu0 0.0
    %1323 = vmatpush1.msra.mxu0 0.0
    %1324 = vmatprep.subr.mxu0 0.0
    %1325 = vmatpush1.msra.mxu0 0.0
    %1326 = vmatprep.subr.mxu0 0.0
    %1327 = vmatpush1.msra.mxu0 0.0
    %1328 = vmatprep.subr.mxu0 0.0
    %1329 = vmatpush1.msra.mxu0 0.0
    %1330 = vmatprep.subr.mxu0 0.0
    %1331 = vmatpush1.msra.mxu0 0.0
    %1332 = vmatprep.subr.mxu0 0.0
    %1333 = vmatpush1.msra.mxu0 0.0
    %1334 = vmatprep.subr.mxu0 0.0
    %1335 = vmatpush1.msra.mxu0 0.0
    %1336 = vmatprep.subr.mxu0 0.0
    %1337 = vmatpush1.msra.mxu0 0.0
    %1338 = vmatprep.subr.mxu0 0.0
    %1339 = vmatpush1.msra.mxu0 0.0
    %1340 = vmatprep.subr.mxu0 0.0
    %1341 = vmatpush1.msra.mxu0 0.0
    %1342 = vmatprep.subr.mxu0 0.0
    %1343 = vmatpush1.msra.mxu0 0.0
    %1344 = vmatprep.subr.mxu0 0.0
    %1345 = vmatpush1.msra.mxu0 0.0
    %1346 = vmatprep.subr.mxu0 0.0
    %1347 = vmatpush1.msra.mxu0 0.0
    %1348 = vmatprep.subr.mxu0 0.0
    %1349 = vmatpush1.msra.mxu0 0.0
    %1350 = vmatprep.subr.mxu0 0.0
    %1351 = vmatpush1.msra.mxu0 0.0
    %1352 = vmatprep.subr.mxu0 0.0
    %1353 = vmatpush1.msra.mxu0 0.0
    %1354 = vmatprep.subr.mxu0 0.0
    %1355 = vmatpush1.msra.mxu0 0.0
    %1356 = vmatprep.subr.mxu0 0.0
    %1357 = vmatpush1.msra.mxu0 0.0
    %1358 = vmatprep.mubr.f32.mxu0 0.0
    %1359 = vmatmul.mubr.f32.gmra.mrb[0].mxu0 %v1288
    %v1360 = vpop.f32.mrb[0].mxu0
    %v1361 = vadd.f32 0.0, %v1360
    %v1362 = vpop.f32.mrb[0].mxu0
    %1363 = vdwg.mxu0
    %v1364 = vadd.f32 %v1281, %v1361
    %v1365 = vld [vmem:[#allocation9 + $0x3] sm:$0x1]
    %v1366 = vlaneseq
    %v1367 = vshrl.u32 %v1366, 7
    %v1368 = vsub.s32 0, %v1367
    %v1369 = vrot.slane %v1365, %v1368
    %v1370 = vadd.f32 %v1364, %v1369
    %v1371 = vmax.f32 %v1370, 0.0
    %v1372 = vld [vmem:[#allocation7 + $0xf0] sm:$0xff]
    %v1373 = vld [vmem:[#allocation7 + $0xf8] sm:$0xff]
    %v1374 = vld [vmem:[#allocation7 + $0x100] sm:$0xff]
    %v1375 = vld [vmem:[#allocation7 + $0x108] sm:$0xff]
    %v1376 = vld [vmem:[#allocation7 + $0x110] sm:$0xff]
    %v1377 = vld [vmem:[#allocation7 + $0x118] sm:$0xff]
    %v1378 = vld [vmem:[#allocation7 + $0x120] sm:$0xff]
    %v1379 = vld [vmem:[#allocation7 + $0x128] sm:$0xff]
    %v1380 = vld [vmem:[#allocation9 + $0x4] sm:$0x1]
    %v1381 = vlaneseq
    %v1382 = vshrl.u32 %v1381, 7
    %v1383 = vsub.s32 0, %v1382
    %v1384 = vrot.slane %v1380, %v1383
    %vm1385 = vcmask 523264
    %v1387 = vsel %vm1385, %v1371, 0
    %1389 = vmatprep.subr.mxu0 0.0
    %1390 = vmatpush1.msra.mxu0 %v1372
    %1391 = vmatprep.subr.mxu0 0.0
    %1392 = vmatpush1.msra.mxu0 %v1373
    %1393 = vmatprep.subr.mxu0 0.0
    %1394 = vmatpush1.msra.mxu0 %v1374
    %1395 = vmatprep.subr.mxu0 0.0
    %1396 = vmatpush1.msra.mxu0 %v1375
    %1397 = vmatprep.subr.mxu0 0.0
    %1398 = vmatpush1.msra.mxu0 %v1376
    %1399 = vmatprep.subr.mxu0 0.0
    %1400 = vmatpush1.msra.mxu0 %v1377
    %1401 = vmatprep.subr.mxu0 0.0
    %1402 = vmatpush1.msra.mxu0 %v1378
    %1403 = vmatprep.subr.mxu0 0.0
    %1404 = vmatpush1.msra.mxu0 %v1379
    %1405 = vmatprep.subr.mxu0 0.0
    %1406 = vmatpush1.msra.mxu0 0.0
    %1407 = vmatprep.subr.mxu0 0.0
    %1408 = vmatpush1.msra.mxu0 0.0
    %1409 = vmatprep.subr.mxu0 0.0
    %1410 = vmatpush1.msra.mxu0 0.0
    %1411 = vmatprep.subr.mxu0 0.0
    %1412 = vmatpush1.msra.mxu0 0.0
    %1413 = vmatprep.subr.mxu0 0.0
    %1414 = vmatpush1.msra.mxu0 0.0
    %1415 = vmatprep.subr.mxu0 0.0
    %1416 = vmatpush1.msra.mxu0 0.0
    %1417 = vmatprep.subr.mxu0 0.0
    %1418 = vmatpush1.msra.mxu0 0.0
    %1419 = vmatprep.subr.mxu0 0.0
    %1420 = vmatpush1.msra.mxu0 0.0
    %1421 = vmatprep.subr.mxu0 0.0
    %1422 = vmatpush1.msra.mxu0 0.0
    %1423 = vmatprep.subr.mxu0 0.0
    %1424 = vmatpush1.msra.mxu0 0.0
    %1425 = vmatprep.subr.mxu0 0.0
    %1426 = vmatpush1.msra.mxu0 0.0
    %1427 = vmatprep.subr.mxu0 0.0
    %1428 = vmatpush1.msra.mxu0 0.0
    %1429 = vmatprep.subr.mxu0 0.0
    %1430 = vmatpush1.msra.mxu0 0.0
    %1431 = vmatprep.subr.mxu0 0.0
    %1432 = vmatpush1.msra.mxu0 0.0
    %1433 = vmatprep.subr.mxu0 0.0
    %1434 = vmatpush1.msra.mxu0 0.0
    %1435 = vmatprep.subr.mxu0 0.0
    %1436 = vmatpush1.msra.mxu0 0.0
    %1437 = vmatprep.subr.mxu0 0.0
    %1438 = vmatpush1.msra.mxu0 0.0
    %1439 = vmatprep.subr.mxu0 0.0
    %1440 = vmatpush1.msra.mxu0 0.0
    %1441 = vmatprep.subr.mxu0 0.0
    %1442 = vmatpush1.msra.mxu0 0.0
    %1443 = vmatprep.subr.mxu0 0.0
    %1444 = vmatpush1.msra.mxu0 0.0
    %1445 = vmatprep.subr.mxu0 0.0
    %1446 = vmatpush1.msra.mxu0 0.0
    %1447 = vmatprep.subr.mxu0 0.0
    %1448 = vmatpush1.msra.mxu0 0.0
    %1449 = vmatprep.subr.mxu0 0.0
    %1450 = vmatpush1.msra.mxu0 0.0
    %1451 = vmatprep.subr.mxu0 0.0
    %1452 = vmatpush1.msra.mxu0 0.0
    %1453 = vmatprep.mubr.f32.mxu0 0.0
    %1454 = vmatmul.mubr.f32.gmra.mrb[0].mxu0 %v1387
    %v1455 = vpop.f32.mrb[0].mxu0
    %v1456 = vadd.f32 %v1384, %v1455
    %v1457 = vpop.f32.mrb[0].mxu0
    %1458 = vdwg.mxu0
    %v1459 = vmax.f32 %v1456, 0.0
    %v1460 = vld [vmem:[#allocation7 + $0x130] sm:$0xff]
    %v1461 = vld [vmem:[#allocation7 + $0x138] sm:$0xff]
    %v1462 = vld [vmem:[#allocation7 + $0x140] sm:$0xff]
    %v1463 = vld [vmem:[#allocation7 + $0x148] sm:$0xff]
    %v1464 = vld [vmem:[#allocation7 + $0x150] sm:$0xff]
    %v1465 = vld [vmem:[#allocation7 + $0x158] sm:$0xff]
    %v1466 = vld [vmem:[#allocation7 + $0x160] sm:$0xff]
    %v1467 = vld [vmem:[#allocation7 + $0x168] sm:$0xff]
    %v1468 = vld [vmem:[#allocation9 + $0x5] sm:$0x1]
    %v1469 = vlaneseq
    %v1470 = vshrl.u32 %v1469, 7
    %v1471 = vsub.s32 0, %v1470
    %v1472 = vrot.slane %v1468, %v1471
    %v1474 = vsel %vm1385, %v1459, 0
    %1476 = vmatprep.subr.mxu0 0.0
    %1477 = vmatpush1.msra.mxu0 %v1460
    %1478 = vmatprep.subr.mxu0 0.0
    %1479 = vmatpush1.msra.mxu0 %v1461
    %1480 = vmatprep.subr.mxu0 0.0
    %1481 = vmatpush1.msra.mxu0 %v1462
    %1482 = vmatprep.subr.mxu0 0.0
    %1483 = vmatpush1.msra.mxu0 %v1463
    %1484 = vmatprep.subr.mxu0 0.0
    %1485 = vmatpush1.msra.mxu0 %v1464
    %1486 = vmatprep.subr.mxu0 0.0
    %1487 = vmatpush1.msra.mxu0 %v1465
    %1488 = vmatprep.subr.mxu0 0.0
    %1489 = vmatpush1.msra.mxu0 %v1466
    %1490 = vmatprep.subr.mxu0 0.0
    %1491 = vmatpush1.msra.mxu0 %v1467
    %1492 = vmatprep.subr.mxu0 0.0
    %1493 = vmatpush1.msra.mxu0 0.0
    %1494 = vmatprep.subr.mxu0 0.0
    %1495 = vmatpush1.msra.mxu0 0.0
    %1496 = vmatprep.subr.mxu0 0.0
    %1497 = vmatpush1.msra.mxu0 0.0
    %1498 = vmatprep.subr.mxu0 0.0
    %1499 = vmatpush1.msra.mxu0 0.0
    %1500 = vmatprep.subr.mxu0 0.0
    %1501 = vmatpush1.msra.mxu0 0.0
    %1502 = vmatprep.subr.mxu0 0.0
    %1503 = vmatpush1.msra.mxu0 0.0
    %1504 = vmatprep.subr.mxu0 0.0
    %1505 = vmatpush1.msra.mxu0 0.0
    %1506 = vmatprep.subr.mxu0 0.0
    %1507 = vmatpush1.msra.mxu0 0.0
    %1508 = vmatprep.subr.mxu0 0.0
    %1509 = vmatpush1.msra.mxu0 0.0
    %1510 = vmatprep.subr.mxu0 0.0
    %1511 = vmatpush1.msra.mxu0 0.0
    %1512 = vmatprep.subr.mxu0 0.0
    %1513 = vmatpush1.msra.mxu0 0.0
    %1514 = vmatprep.subr.mxu0 0.0
    %1515 = vmatpush1.msra.mxu0 0.0
    %1516 = vmatprep.subr.mxu0 0.0
    %1517 = vmatpush1.msra.mxu0 0.0
    %1518 = vmatprep.subr.mxu0 0.0
    %1519 = vmatpush1.msra.mxu0 0.0
    %1520 = vmatprep.subr.mxu0 0.0
    %1521 = vmatpush1.msra.mxu0 0.0
    %1522 = vmatprep.subr.mxu0 0.0
    %1523 = vmatpush1.msra.mxu0 0.0
    %1524 = vmatprep.subr.mxu0 0.0
    %1525 = vmatpush1.msra.mxu0 0.0
    %1526 = vmatprep.subr.mxu0 0.0
    %1527 = vmatpush1.msra.mxu0 0.0
    %1528 = vmatprep.subr.mxu0 0.0
    %1529 = vmatpush1.msra.mxu0 0.0
    %1530 = vmatprep.subr.mxu0 0.0
    %1531 = vmatpush1.msra.mxu0 0.0
    %1532 = vmatprep.subr.mxu0 0.0
    %1533 = vmatpush1.msra.mxu0 0.0
    %1534 = vmatprep.subr.mxu0 0.0
    %1535 = vmatpush1.msra.mxu0 0.0
    %1536 = vmatprep.subr.mxu0 0.0
    %1537 = vmatpush1.msra.mxu0 0.0
    %1538 = vmatprep.subr.mxu0 0.0
    %1539 = vmatpush1.msra.mxu0 0.0
    %1540 = vmatprep.mubr.f32.mxu0 0.0
    %1541 = vmatmul.mubr.f32.gmra.mrb[0].mxu0 %v1474
    %v1542 = vpop.f32.mrb[0].mxu0
    %v1543 = vadd.f32 %v1472, %v1542
    %v1544 = vpop.f32.mrb[0].mxu0
    %1545 = vdwg.mxu0
    %vm1546 = vcmask 9216
    %1547 = vst.msk [vmem:[%s6] sm:$0x3] %vm1546, %v1543
    // Predicated region
    $region46: #{critic_forward.1} parent=1 // pred_check
      _
    $region47: #{critic_forward.1} parent=1 // pred_check_branch
      %1549 = sbr.rel (0) target = $region49
    $region48: #{critic_forward.1} parent=1 // pred_region
      _
    $region49: #{critic_forward.1} parent=1 // pred_fallthru
      _
    // Predicated region
    $region50: #{critic_forward.1} parent=1 // pred_check
      _
    $region51: #{critic_forward.1} parent=1 // pred_check_branch
      %1551 = sbr.rel (0) target = $region53
    $region52: #{critic_forward.1} parent=1 // pred_region
      _
    $region53: #{critic_forward.1} parent=1 // pred_fallthru
      _
    %1552 = vsyncpa [#allocation3], 1
    %1553 = vsyncpa [#allocation5], 1
    %1554 = vsyncpa [#allocation8], 1

</llo_original>
